<compile_context>
chip_gen: v7x
topology: tpu7x:2x2x1
jax: 0.10.0
libtpu: 0.0.40
codegen_flags: <defaults>
</compile_context>

<pallas_src>
import jax
import jax.numpy as jnp
from jax.experimental import pallas as pl
from jax.experimental.pallas import tpu as pltpu


# ---------------------------------------------------------------------------
# Fused kernel: conv1+ReLU+pool1 + conv2+ReLU+pool2 + FC1/FC2/FC3, per image.
# ---------------------------------------------------------------------------
def _mycnn_kernel(x_ref,                     # (1, 30, 30)  pre-padded image
                  b1m_ref, b1b_ref,          # (3, 30, 168), (1, 168)
                  ph1_ref, pw1_ref,          # (14, 28),    (168, 84)
                  b2m_ref, b2b_ref,          # (5, 84, 160), (1, 160)
                  ph2_ref, pw2_ref,          # (5, 10),     (160, 80)
                  g1_ref, fb1_ref,           # (5, 80, 120), (1, 120)
                  fw2t_ref, fb2_ref,         # (120, 84),   (1, 84)
                  fw3t_ref, fb3_ref,         # (84, 10),    (1, 10)
                  o_ref):                    # (1, 1, 10)
    f32 = jnp.float32
    xp = x_ref[0]                                            # (30, 30)

    # --- CNN1: Conv2d(1->6, 3x3, pad=1) as 3 banded matmuls + ReLU --------
    # a1[y, co*28 + x] = conv1 output channel co at spatial (y, x).
    a1 = jnp.dot(xp[0:28, :], b1m_ref[0], preferred_element_type=f32)
    for i in (1, 2):
        a1 = a1 + jnp.dot(xp[i:i + 28, :], b1m_ref[i],
                          preferred_element_type=f32)
    a1 = jnp.maximum(a1 + b1b_ref[...], 0.0)                 # (28, 168)

    # --- AvgPool2d(2,2): row-pool (left matmul) + per-channel col-pool ----
    p1 = jnp.dot(jnp.dot(ph1_ref[...], a1, preferred_element_type=f32),
                 pw1_ref[...], preferred_element_type=f32)   # (14, 84)

    # --- CNN2: Conv2d(6->16, 5x5, valid) as 5 banded matmuls + ReLU -------
    # a2[y, co*10 + x] = conv2 output channel co at spatial (y, x).
    a2 = jnp.dot(p1[0:10, :], b2m_ref[0], preferred_element_type=f32)
    for i in (1, 2, 3, 4):
        a2 = a2 + jnp.dot(p1[i:i + 10, :], b2m_ref[i],
                          preferred_element_type=f32)
    a2 = jnp.maximum(a2 + b2b_ref[...], 0.0)                 # (10, 160)

    # --- AvgPool2d(2,2) ----------------------------------------------------
    p2 = jnp.dot(jnp.dot(ph2_ref[...], a2, preferred_element_type=f32),
                 pw2_ref[...], preferred_element_type=f32)   # (5, 80)

    # --- FC1: Linear(400,120); torch Flatten (C,H,W) order baked into g1 --
    h = jnp.dot(p2[0:1, :], g1_ref[0], preferred_element_type=f32)
    for p in (1, 2, 3, 4):
        h = h + jnp.dot(p2[p:p + 1, :], g1_ref[p],
                        preferred_element_type=f32)
    h = jnp.maximum(h + fb1_ref[...], 0.0)                   # (1, 120)

    # --- FC2 / FC3 ---------------------------------------------------------
    h = jnp.maximum(jnp.dot(h, fw2t_ref[...], preferred_element_type=f32)
                    + fb2_ref[...], 0.0)                     # (1, 84)
    o_ref[0] = (jnp.dot(h, fw3t_ref[...], preferred_element_type=f32)
                + fb3_ref[...])                              # (1, 10)


# ---------------------------------------------------------------------------
# Parameter init (deterministic, torch-like uniform(-1/sqrt(fan_in), +))
# ---------------------------------------------------------------------------
def init_params(key):
    def uni(k, shape, fan_in):
        bound = 1.0 / jnp.sqrt(jnp.float32(fan_in))
        return jax.random.uniform(k, shape, jnp.float32, -bound, bound)

    ks = jax.random.split(key, 10)
    return {
        # CNN1: Conv2d(1, 6, k=3, s=1, p=1)
        "w1": uni(ks[0], (6, 1, 3, 3), 1 * 3 * 3),
        "b1": uni(ks[1], (6,), 1 * 3 * 3),
        # CNN2: Conv2d(6, 16, k=5, s=1, p=0)
        "w2": uni(ks[2], (16, 6, 5, 5), 6 * 5 * 5),
        "b2": uni(ks[3], (16,), 6 * 5 * 5),
        # FC: Linear(400,120), Linear(120,84), Linear(84,10)  (torch (out,in))
        "fw1": uni(ks[4], (120, 400), 400), "fb1": uni(ks[5], (120,), 400),
        "fw2": uni(ks[6], (84, 120), 120),  "fb2": uni(ks[7], (84,), 120),
        "fw3": uni(ks[8], (10, 84), 84),    "fb3": uni(ks[9], (10,), 84),
    }


# ---------------------------------------------------------------------------
# One-time weight re-layout into the kernel's structure matrices.
# ---------------------------------------------------------------------------
def prepare_kernel_params(params):
    f32 = jnp.float32
    w1 = params["w1"].astype(f32)     # (6, 1, 3, 3)
    b1 = params["b1"].astype(f32)     # (6,)
    w2 = params["w2"].astype(f32)     # (16, 6, 5, 5)
    b2 = params["b2"].astype(f32)     # (16,)
    fw1 = params["fw1"].astype(f32)   # (120, 400)
    fw2 = params["fw2"].astype(f32)   # (84, 120)
    fw3 = params["fw3"].astype(f32)   # (10, 84)

    # conv1 banded weights: b1m[i, w_in, co*28 + x] = w1[co,0,i,w_in-x]
    # for 0 <= w_in - x <= 2 (input pre-padded to 30, output width 28).
    d1 = jnp.arange(30)[:, None] - jnp.arange(28)[None, :]          # (30, 28)
    m1 = (d1 >= 0) & (d1 <= 2)
    band1 = jnp.where(m1[None, None],
                      w1[:, 0, :, :][:, :, jnp.clip(d1, 0, 2)], 0.0)  # (6,3,30,28)
    b1m = band1.transpose(1, 2, 0, 3).reshape(3, 30, 6 * 28)

    # conv2 banded weights: b2m[i, ci*14 + w, co*10 + x] = w2[co,ci,i,w-x]
    # for 0 <= w - x <= 4 (input width 14, output width 10).
    d2 = jnp.arange(14)[:, None] - jnp.arange(10)[None, :]          # (14, 10)
    m2 = (d2 >= 0) & (d2 <= 4)
    band2 = jnp.where(m2[None, None, None],
                      w2[:, :, :, jnp.clip(d2, 0, 4)], 0.0)   # (16,6,5,14,10)
    b2m = band2.transpose(2, 1, 3, 0, 4).reshape(5, 6 * 14, 16 * 10)

    # AvgPool(2,2) matrices: ph[p, y] = 0.5 * [y//2 == p]; right side is the
    # per-channel block-diagonal transpose (so 0.5 * 0.5 = 0.25 per element).
    def pool_mat(hw):
        oh = hw // 2
        return 0.5 * (jnp.arange(hw)[None, :] // 2 ==
                      jnp.arange(oh)[:, None]).astype(f32)    # (oh, hw)

    ph1 = pool_mat(28)                                        # (14, 28)
    ph2 = pool_mat(10)                                        # (5, 10)
    pw1bd = jnp.kron(jnp.eye(6, dtype=f32), ph1.T)            # (168, 84)
    pw2bd = jnp.kron(jnp.eye(16, dtype=f32), ph2.T)           # (160, 80)

    # FC1 with torch's (C,H,W) Flatten order folded in:
    # g1[p, co*5 + q, k] = fw1[k, co*25 + p*5 + q]
    g1 = fw1.reshape(120, 16, 5, 5).transpose(2, 1, 3, 0).reshape(5, 80, 120)

    return {
        "b1m": b1m, "b1b": jnp.repeat(b1, 28)[None, :],
        "ph1": ph1, "pw1bd": pw1bd,
        "b2m": b2m, "b2b": jnp.repeat(b2, 10)[None, :],
        "ph2": ph2, "pw2bd": pw2bd,
        "g1": g1, "fb1": params["fb1"].astype(f32)[None, :],
        "fw2t": fw2.T, "fb2": params["fb2"].astype(f32)[None, :],
        "fw3t": fw3.T, "fb3": params["fb3"].astype(f32)[None, :],
    }


_WEIGHT_ORDER = ["b1m", "b1b", "ph1", "pw1bd", "b2m", "b2b", "ph2", "pw2bd",
                 "g1", "fb1", "fw2t", "fb2", "fw3t", "fb3"]


# ---------------------------------------------------------------------------
# Forward pass (mirrors MyCNN.forward) — one fused pallas_call.
# ---------------------------------------------------------------------------
@jax.jit
def mycnn_forward(kparams, x):
    x = x.reshape(-1, 28, 28).astype(jnp.float32)
    n = x.shape[0]
    xp = jnp.pad(x, ((0, 0), (1, 1), (1, 1)))                # (N, 30, 30)

    weights = [kparams[name] for name in _WEIGHT_ORDER]

    def const_spec(a):
        nd = a.ndim
        return pl.BlockSpec(a.shape, lambda i, _nd=nd: (0,) * _nd)

    out = pl.pallas_call(
        _mycnn_kernel,
        out_shape=jax.ShapeDtypeStruct((n, 1, 10), jnp.float32),
        grid=(n,),
        in_specs=[pl.BlockSpec((1, 30, 30), lambda i: (i, 0, 0))]
                 + [const_spec(w) for w in weights],
        out_specs=pl.BlockSpec((1, 1, 10), lambda i: (i, 0, 0)),
        compiler_params=pltpu.CompilerParams(
            dimension_semantics=("parallel",),
            vmem_limit_bytes=32 * 1024 * 1024),
    )(xp, *weights)
    return out.reshape(n, 10)


# ---------------------------------------------------------------------------
# Pure-JAX reference (for a correctness sanity check).
# ---------------------------------------------------------------------------
def ref_forward(params, x):
    hp = jax.lax.Precision.HIGHEST
    x = x.reshape(-1, 1, 28, 28).astype(jnp.float32)

    def conv(y, w, b, pad):
        y = jax.lax.conv_general_dilated(
            y, w, window_strides=(1, 1), padding=[(pad, pad), (pad, pad)],
            dimension_numbers=("NCHW", "OIHW", "NCHW"), precision=hp)
        return y + b[None, :, None, None]

    def pool(y):
        return 0.25 * (y[:, :, 0::2, 0::2] + y[:, :, 0::2, 1::2]
                       + y[:, :, 1::2, 0::2] + y[:, :, 1::2, 1::2])

    x = pool(jax.nn.relu(conv(x, params["w1"], params["b1"], 1)))
    x = pool(jax.nn.relu(conv(x, params["w2"], params["b2"], 0)))
    x = x.reshape(x.shape[0], -1)
    x = jax.nn.relu(jnp.dot(x, params["fw1"].T, precision=hp) + params["fb1"])
    x = jax.nn.relu(jnp.dot(x, params["fw2"].T, precision=hp) + params["fb2"])
    return jnp.dot(x, params["fw3"].T, precision=hp) + params["fb3"]


if __name__ == "__main__":
    key = jax.random.PRNGKey(0)
    k_params, k_x = jax.random.split(key)
    params = init_params(k_params)
    kparams = prepare_kernel_params(params)

    # Small batch of flattened 28x28 "images" (MNIST-style input).
    batch = 2
    x = jax.random.normal(k_x, (batch, 784), dtype=jnp.float32)

    logits = jax.block_until_ready(mycnn_forward(kparams, x))
    assert logits.shape == (batch, 10), logits.shape

    ref = jax.block_until_ready(ref_forward(params, x))
    max_err = float(jnp.max(jnp.abs(logits - ref)))
    assert jnp.allclose(logits, ref, atol=2e-2, rtol=2e-2), max_err

    print("KERNEL_OK")
</pallas_src>

<mosaic_0001>
module attributes {stable_mosaic.version = 11 : i64} {
  func.func @_mycnn_kernel(%arg0: i32, %arg1: memref<1x30x30xf32, #tpu.memory_space<vmem>>, %arg2: memref<3x30x168xf32, #tpu.memory_space<vmem>>, %arg3: memref<1x168xf32, #tpu.memory_space<vmem>>, %arg4: memref<14x28xf32, #tpu.memory_space<vmem>>, %arg5: memref<168x84xf32, #tpu.memory_space<vmem>>, %arg6: memref<5x84x160xf32, #tpu.memory_space<vmem>>, %arg7: memref<1x160xf32, #tpu.memory_space<vmem>>, %arg8: memref<5x10xf32, #tpu.memory_space<vmem>>, %arg9: memref<160x80xf32, #tpu.memory_space<vmem>>, %arg10: memref<5x80x120xf32, #tpu.memory_space<vmem>>, %arg11: memref<1x120xf32, #tpu.memory_space<vmem>>, %arg12: memref<120x84xf32, #tpu.memory_space<vmem>>, %arg13: memref<1x84xf32, #tpu.memory_space<vmem>>, %arg14: memref<84x10xf32, #tpu.memory_space<vmem>>, %arg15: memref<1x10xf32, #tpu.memory_space<vmem>>, %arg16: memref<1x1x10xf32, #tpu.memory_space<vmem>>) attributes {dimension_semantics = [#tpu.dimension_semantics<parallel>], iteration_bounds = array<i64: 2>, scalar_prefetch = 0 : i64, scratch_operands = 0 : i64, tpu.core_type = #tpu.core_type<tc>, window_params = [{transform_indices = @transform_0, window_bounds = array<i64: 1, 30, 30>}, {pipeline_mode = #tpu.pipeline_mode<synchronous>, transform_indices = @transform_1, window_bounds = array<i64: 3, 30, 168>}, {pipeline_mode = #tpu.pipeline_mode<synchronous>, transform_indices = @transform_2, window_bounds = array<i64: 1, 168>}, {pipeline_mode = #tpu.pipeline_mode<synchronous>, transform_indices = @transform_3, window_bounds = array<i64: 14, 28>}, {pipeline_mode = #tpu.pipeline_mode<synchronous>, transform_indices = @transform_4, window_bounds = array<i64: 168, 84>}, {pipeline_mode = #tpu.pipeline_mode<synchronous>, transform_indices = @transform_5, window_bounds = array<i64: 5, 84, 160>}, {pipeline_mode = #tpu.pipeline_mode<synchronous>, transform_indices = @transform_6, window_bounds = array<i64: 1, 160>}, {pipeline_mode = #tpu.pipeline_mode<synchronous>, transform_indices = @transform_7, window_bounds = array<i64: 5, 10>}, {pipeline_mode = #tpu.pipeline_mode<synchronous>, transform_indices = @transform_8, window_bounds = array<i64: 160, 80>}, {pipeline_mode = #tpu.pipeline_mode<synchronous>, transform_indices = @transform_9, window_bounds = array<i64: 5, 80, 120>}, {pipeline_mode = #tpu.pipeline_mode<synchronous>, transform_indices = @transform_10, window_bounds = array<i64: 1, 120>}, {pipeline_mode = #tpu.pipeline_mode<synchronous>, transform_indices = @transform_11, window_bounds = array<i64: 120, 84>}, {pipeline_mode = #tpu.pipeline_mode<synchronous>, transform_indices = @transform_12, window_bounds = array<i64: 1, 84>}, {pipeline_mode = #tpu.pipeline_mode<synchronous>, transform_indices = @transform_13, window_bounds = array<i64: 84, 10>}, {pipeline_mode = #tpu.pipeline_mode<synchronous>, transform_indices = @transform_14, window_bounds = array<i64: 1, 10>}, {transform_indices = @transform_15, window_bounds = array<i64: 1, 1, 10>}]} {
    %c0 = arith.constant 0 : index
    %c0_0 = arith.constant 0 : index
    %c0_1 = arith.constant 0 : index
    %0 = vector.load %arg1[%c0, %c0_0, %c0_1] : memref<1x30x30xf32, #tpu.memory_space<vmem>>, vector<1x30x30xf32>
    %1 = vector.shape_cast %0 : vector<1x30x30xf32> to vector<30x30xf32>
    %2 = vector.extract_strided_slice %1 {offsets = [0, 0], sizes = [28, 30], strides = [1, 1]} : vector<30x30xf32> to vector<28x30xf32>
    %c0_2 = arith.constant 0 : index
    %c0_3 = arith.constant 0 : index
    %c0_4 = arith.constant 0 : index
    %3 = vector.load %arg2[%c0_2, %c0_3, %c0_4] : memref<3x30x168xf32, #tpu.memory_space<vmem>>, vector<1x30x168xf32>
    %4 = vector.shape_cast %3 : vector<1x30x168xf32> to vector<30x168xf32>
    %cst = arith.constant dense<0.000000e+00> : vector<28x168xf32>
    %5 = tpu.matmul %2, %4, %cst {dimension_numbers = #tpu.dot_dimension_numbers<[1], [0], [0], [1], [0, 0, 1, 1], [], []>} : vector<28x30xf32>, vector<30x168xf32>, vector<28x168xf32> -> vector<28x168xf32>
    %6 = vector.extract_strided_slice %1 {offsets = [1, 0], sizes = [28, 30], strides = [1, 1]} : vector<30x30xf32> to vector<28x30xf32>
    %c1 = arith.constant 1 : index
    %c0_5 = arith.constant 0 : index
    %c0_6 = arith.constant 0 : index
    %7 = vector.load %arg2[%c1, %c0_5, %c0_6] : memref<3x30x168xf32, #tpu.memory_space<vmem>>, vector<1x30x168xf32>
    %8 = vector.shape_cast %7 : vector<1x30x168xf32> to vector<30x168xf32>
    %cst_7 = arith.constant dense<0.000000e+00> : vector<28x168xf32>
    %9 = tpu.matmul %6, %8, %cst_7 {dimension_numbers = #tpu.dot_dimension_numbers<[1], [0], [0], [1], [0, 0, 1, 1], [], []>} : vector<28x30xf32>, vector<30x168xf32>, vector<28x168xf32> -> vector<28x168xf32>
    %10 = arith.addf %5, %9 : vector<28x168xf32>
    %11 = vector.extract_strided_slice %1 {offsets = [2, 0], sizes = [28, 30], strides = [1, 1]} : vector<30x30xf32> to vector<28x30xf32>
    %c2 = arith.constant 2 : index
    %c0_8 = arith.constant 0 : index
    %c0_9 = arith.constant 0 : index
    %12 = vector.load %arg2[%c2, %c0_8, %c0_9] : memref<3x30x168xf32, #tpu.memory_space<vmem>>, vector<1x30x168xf32>
    %13 = vector.shape_cast %12 : vector<1x30x168xf32> to vector<30x168xf32>
    %cst_10 = arith.constant dense<0.000000e+00> : vector<28x168xf32>
    %14 = tpu.matmul %11, %13, %cst_10 {dimension_numbers = #tpu.dot_dimension_numbers<[1], [0], [0], [1], [0, 0, 1, 1], [], []>} : vector<28x30xf32>, vector<30x168xf32>, vector<28x168xf32> -> vector<28x168xf32>
    %15 = arith.addf %10, %14 : vector<28x168xf32>
    %c0_11 = arith.constant 0 : index
    %c0_12 = arith.constant 0 : index
    %16 = vector.load %arg3[%c0_11, %c0_12] : memref<1x168xf32, #tpu.memory_space<vmem>>, vector<1x168xf32>
    %17 = vector.broadcast %16 : vector<1x168xf32> to vector<28x168xf32>
    %18 = arith.addf %15, %17 : vector<28x168xf32>
    %cst_13 = arith.constant 0.000000e+00 : f32
    %19 = vector.broadcast %cst_13 : f32 to vector<28x168xf32>
    %20 = arith.maximumf %18, %19 : vector<28x168xf32>
    %c0_14 = arith.constant 0 : index
    %c0_15 = arith.constant 0 : index
    %21 = vector.load %arg4[%c0_14, %c0_15] : memref<14x28xf32, #tpu.memory_space<vmem>>, vector<14x28xf32>
    %cst_16 = arith.constant dense<0.000000e+00> : vector<14x168xf32>
    %22 = tpu.matmul %21, %20, %cst_16 {dimension_numbers = #tpu.dot_dimension_numbers<[1], [0], [0], [1], [0, 0, 1, 1], [], []>} : vector<14x28xf32>, vector<28x168xf32>, vector<14x168xf32> -> vector<14x168xf32>
    %c0_17 = arith.constant 0 : index
    %c0_18 = arith.constant 0 : index
    %23 = vector.load %arg5[%c0_17, %c0_18] : memref<168x84xf32, #tpu.memory_space<vmem>>, vector<168x84xf32>
    %cst_19 = arith.constant dense<0.000000e+00> : vector<14x84xf32>
    %24 = tpu.matmul %22, %23, %cst_19 {dimension_numbers = #tpu.dot_dimension_numbers<[1], [0], [0], [1], [0, 0, 1, 1], [], []>} : vector<14x168xf32>, vector<168x84xf32>, vector<14x84xf32> -> vector<14x84xf32>
    %25 = vector.extract_strided_slice %24 {offsets = [0, 0], sizes = [10, 84], strides = [1, 1]} : vector<14x84xf32> to vector<10x84xf32>
    %c0_20 = arith.constant 0 : index
    %c0_21 = arith.constant 0 : index
    %c0_22 = arith.constant 0 : index
    %26 = vector.load %arg6[%c0_20, %c0_21, %c0_22] : memref<5x84x160xf32, #tpu.memory_space<vmem>>, vector<1x84x160xf32>
    %27 = vector.shape_cast %26 : vector<1x84x160xf32> to vector<84x160xf32>
    %cst_23 = arith.constant dense<0.000000e+00> : vector<10x160xf32>
    %28 = tpu.matmul %25, %27, %cst_23 {dimension_numbers = #tpu.dot_dimension_numbers<[1], [0], [0], [1], [0, 0, 1, 1], [], []>} : vector<10x84xf32>, vector<84x160xf32>, vector<10x160xf32> -> vector<10x160xf32>
    %29 = vector.extract_strided_slice %24 {offsets = [1, 0], sizes = [10, 84], strides = [1, 1]} : vector<14x84xf32> to vector<10x84xf32>
    %c1_24 = arith.constant 1 : index
    %c0_25 = arith.constant 0 : index
    %c0_26 = arith.constant 0 : index
    %30 = vector.load %arg6[%c1_24, %c0_25, %c0_26] : memref<5x84x160xf32, #tpu.memory_space<vmem>>, vector<1x84x160xf32>
    %31 = vector.shape_cast %30 : vector<1x84x160xf32> to vector<84x160xf32>
    %cst_27 = arith.constant dense<0.000000e+00> : vector<10x160xf32>
    %32 = tpu.matmul %29, %31, %cst_27 {dimension_numbers = #tpu.dot_dimension_numbers<[1], [0], [0], [1], [0, 0, 1, 1], [], []>} : vector<10x84xf32>, vector<84x160xf32>, vector<10x160xf32> -> vector<10x160xf32>
    %33 = arith.addf %28, %32 : vector<10x160xf32>
    %34 = vector.extract_strided_slice %24 {offsets = [2, 0], sizes = [10, 84], strides = [1, 1]} : vector<14x84xf32> to vector<10x84xf32>
    %c2_28 = arith.constant 2 : index
    %c0_29 = arith.constant 0 : index
    %c0_30 = arith.constant 0 : index
    %35 = vector.load %arg6[%c2_28, %c0_29, %c0_30] : memref<5x84x160xf32, #tpu.memory_space<vmem>>, vector<1x84x160xf32>
    %36 = vector.shape_cast %35 : vector<1x84x160xf32> to vector<84x160xf32>
    %cst_31 = arith.constant dense<0.000000e+00> : vector<10x160xf32>
    %37 = tpu.matmul %34, %36, %cst_31 {dimension_numbers = #tpu.dot_dimension_numbers<[1], [0], [0], [1], [0, 0, 1, 1], [], []>} : vector<10x84xf32>, vector<84x160xf32>, vector<10x160xf32> -> vector<10x160xf32>
    %38 = arith.addf %33, %37 : vector<10x160xf32>
    %39 = vector.extract_strided_slice %24 {offsets = [3, 0], sizes = [10, 84], strides = [1, 1]} : vector<14x84xf32> to vector<10x84xf32>
    %c3 = arith.constant 3 : index
    %c0_32 = arith.constant 0 : index
    %c0_33 = arith.constant 0 : index
    %40 = vector.load %arg6[%c3, %c0_32, %c0_33] : memref<5x84x160xf32, #tpu.memory_space<vmem>>, vector<1x84x160xf32>
    %41 = vector.shape_cast %40 : vector<1x84x160xf32> to vector<84x160xf32>
    %cst_34 = arith.constant dense<0.000000e+00> : vector<10x160xf32>
    %42 = tpu.matmul %39, %41, %cst_34 {dimension_numbers = #tpu.dot_dimension_numbers<[1], [0], [0], [1], [0, 0, 1, 1], [], []>} : vector<10x84xf32>, vector<84x160xf32>, vector<10x160xf32> -> vector<10x160xf32>
    %43 = arith.addf %38, %42 : vector<10x160xf32>
    %44 = vector.extract_strided_slice %24 {offsets = [4, 0], sizes = [10, 84], strides = [1, 1]} : vector<14x84xf32> to vector<10x84xf32>
    %c4 = arith.constant 4 : index
    %c0_35 = arith.constant 0 : index
    %c0_36 = arith.constant 0 : index
    %45 = vector.load %arg6[%c4, %c0_35, %c0_36] : memref<5x84x160xf32, #tpu.memory_space<vmem>>, vector<1x84x160xf32>
    %46 = vector.shape_cast %45 : vector<1x84x160xf32> to vector<84x160xf32>
    %cst_37 = arith.constant dense<0.000000e+00> : vector<10x160xf32>
    %47 = tpu.matmul %44, %46, %cst_37 {dimension_numbers = #tpu.dot_dimension_numbers<[1], [0], [0], [1], [0, 0, 1, 1], [], []>} : vector<10x84xf32>, vector<84x160xf32>, vector<10x160xf32> -> vector<10x160xf32>
    %48 = arith.addf %43, %47 : vector<10x160xf32>
    %c0_38 = arith.constant 0 : index
    %c0_39 = arith.constant 0 : index
    %49 = vector.load %arg7[%c0_38, %c0_39] : memref<1x160xf32, #tpu.memory_space<vmem>>, vector<1x160xf32>
    %50 = vector.broadcast %49 : vector<1x160xf32> to vector<10x160xf32>
    %51 = arith.addf %48, %50 : vector<10x160xf32>
    %cst_40 = arith.constant 0.000000e+00 : f32
    %52 = vector.broadcast %cst_40 : f32 to vector<10x160xf32>
    %53 = arith.maximumf %51, %52 : vector<10x160xf32>
    %c0_41 = arith.constant 0 : index
    %c0_42 = arith.constant 0 : index
    %54 = vector.load %arg8[%c0_41, %c0_42] : memref<5x10xf32, #tpu.memory_space<vmem>>, vector<5x10xf32>
    %cst_43 = arith.constant dense<0.000000e+00> : vector<5x160xf32>
    %55 = tpu.matmul %54, %53, %cst_43 {dimension_numbers = #tpu.dot_dimension_numbers<[1], [0], [0], [1], [0, 0, 1, 1], [], []>} : vector<5x10xf32>, vector<10x160xf32>, vector<5x160xf32> -> vector<5x160xf32>
    %c0_44 = arith.constant 0 : index
    %c0_45 = arith.constant 0 : index
    %56 = vector.load %arg9[%c0_44, %c0_45] : memref<160x80xf32, #tpu.memory_space<vmem>>, vector<160x80xf32>
    %cst_46 = arith.constant dense<0.000000e+00> : vector<5x80xf32>
    %57 = tpu.matmul %55, %56, %cst_46 {dimension_numbers = #tpu.dot_dimension_numbers<[1], [0], [0], [1], [0, 0, 1, 1], [], []>} : vector<5x160xf32>, vector<160x80xf32>, vector<5x80xf32> -> vector<5x80xf32>
    %58 = vector.extract_strided_slice %57 {offsets = [0, 0], sizes = [1, 80], strides = [1, 1]} : vector<5x80xf32> to vector<1x80xf32>
    %c0_47 = arith.constant 0 : index
    %c0_48 = arith.constant 0 : index
    %c0_49 = arith.constant 0 : index
    %59 = vector.load %arg10[%c0_47, %c0_48, %c0_49] : memref<5x80x120xf32, #tpu.memory_space<vmem>>, vector<1x80x120xf32>
    %60 = vector.shape_cast %59 : vector<1x80x120xf32> to vector<80x120xf32>
    %cst_50 = arith.constant dense<0.000000e+00> : vector<1x120xf32>
    %61 = tpu.matmul %58, %60, %cst_50 {dimension_numbers = #tpu.dot_dimension_numbers<[1], [0], [0], [1], [0, 0, 1, 1], [], []>} : vector<1x80xf32>, vector<80x120xf32>, vector<1x120xf32> -> vector<1x120xf32>
    %62 = vector.extract_strided_slice %57 {offsets = [1, 0], sizes = [1, 80], strides = [1, 1]} : vector<5x80xf32> to vector<1x80xf32>
    %c1_51 = arith.constant 1 : index
    %c0_52 = arith.constant 0 : index
    %c0_53 = arith.constant 0 : index
    %63 = vector.load %arg10[%c1_51, %c0_52, %c0_53] : memref<5x80x120xf32, #tpu.memory_space<vmem>>, vector<1x80x120xf32>
    %64 = vector.shape_cast %63 : vector<1x80x120xf32> to vector<80x120xf32>
    %cst_54 = arith.constant dense<0.000000e+00> : vector<1x120xf32>
    %65 = tpu.matmul %62, %64, %cst_54 {dimension_numbers = #tpu.dot_dimension_numbers<[1], [0], [0], [1], [0, 0, 1, 1], [], []>} : vector<1x80xf32>, vector<80x120xf32>, vector<1x120xf32> -> vector<1x120xf32>
    %66 = arith.addf %61, %65 : vector<1x120xf32>
    %67 = vector.extract_strided_slice %57 {offsets = [2, 0], sizes = [1, 80], strides = [1, 1]} : vector<5x80xf32> to vector<1x80xf32>
    %c2_55 = arith.constant 2 : index
    %c0_56 = arith.constant 0 : index
    %c0_57 = arith.constant 0 : index
    %68 = vector.load %arg10[%c2_55, %c0_56, %c0_57] : memref<5x80x120xf32, #tpu.memory_space<vmem>>, vector<1x80x120xf32>
    %69 = vector.shape_cast %68 : vector<1x80x120xf32> to vector<80x120xf32>
    %cst_58 = arith.constant dense<0.000000e+00> : vector<1x120xf32>
    %70 = tpu.matmul %67, %69, %cst_58 {dimension_numbers = #tpu.dot_dimension_numbers<[1], [0], [0], [1], [0, 0, 1, 1], [], []>} : vector<1x80xf32>, vector<80x120xf32>, vector<1x120xf32> -> vector<1x120xf32>
    %71 = arith.addf %66, %70 : vector<1x120xf32>
    %72 = vector.extract_strided_slice %57 {offsets = [3, 0], sizes = [1, 80], strides = [1, 1]} : vector<5x80xf32> to vector<1x80xf32>
    %c3_59 = arith.constant 3 : index
    %c0_60 = arith.constant 0 : index
    %c0_61 = arith.constant 0 : index
    %73 = vector.load %arg10[%c3_59, %c0_60, %c0_61] : memref<5x80x120xf32, #tpu.memory_space<vmem>>, vector<1x80x120xf32>
    %74 = vector.shape_cast %73 : vector<1x80x120xf32> to vector<80x120xf32>
    %cst_62 = arith.constant dense<0.000000e+00> : vector<1x120xf32>
    %75 = tpu.matmul %72, %74, %cst_62 {dimension_numbers = #tpu.dot_dimension_numbers<[1], [0], [0], [1], [0, 0, 1, 1], [], []>} : vector<1x80xf32>, vector<80x120xf32>, vector<1x120xf32> -> vector<1x120xf32>
    %76 = arith.addf %71, %75 : vector<1x120xf32>
    %77 = vector.extract_strided_slice %57 {offsets = [4, 0], sizes = [1, 80], strides = [1, 1]} : vector<5x80xf32> to vector<1x80xf32>
    %c4_63 = arith.constant 4 : index
    %c0_64 = arith.constant 0 : index
    %c0_65 = arith.constant 0 : index
    %78 = vector.load %arg10[%c4_63, %c0_64, %c0_65] : memref<5x80x120xf32, #tpu.memory_space<vmem>>, vector<1x80x120xf32>
    %79 = vector.shape_cast %78 : vector<1x80x120xf32> to vector<80x120xf32>
    %cst_66 = arith.constant dense<0.000000e+00> : vector<1x120xf32>
    %80 = tpu.matmul %77, %79, %cst_66 {dimension_numbers = #tpu.dot_dimension_numbers<[1], [0], [0], [1], [0, 0, 1, 1], [], []>} : vector<1x80xf32>, vector<80x120xf32>, vector<1x120xf32> -> vector<1x120xf32>
    %81 = arith.addf %76, %80 : vector<1x120xf32>
    %c0_67 = arith.constant 0 : index
    %c0_68 = arith.constant 0 : index
    %82 = vector.load %arg11[%c0_67, %c0_68] : memref<1x120xf32, #tpu.memory_space<vmem>>, vector<1x120xf32>
    %83 = arith.addf %81, %82 : vector<1x120xf32>
    %cst_69 = arith.constant 0.000000e+00 : f32
    %84 = vector.broadcast %cst_69 : f32 to vector<1x120xf32>
    %85 = arith.maximumf %83, %84 : vector<1x120xf32>
    %c0_70 = arith.constant 0 : index
    %c0_71 = arith.constant 0 : index
    %86 = vector.load %arg12[%c0_70, %c0_71] : memref<120x84xf32, #tpu.memory_space<vmem>>, vector<120x84xf32>
    %cst_72 = arith.constant dense<0.000000e+00> : vector<1x84xf32>
    %87 = tpu.matmul %85, %86, %cst_72 {dimension_numbers = #tpu.dot_dimension_numbers<[1], [0], [0], [1], [0, 0, 1, 1], [], []>} : vector<1x120xf32>, vector<120x84xf32>, vector<1x84xf32> -> vector<1x84xf32>
    %c0_73 = arith.constant 0 : index
    %c0_74 = arith.constant 0 : index
    %88 = vector.load %arg13[%c0_73, %c0_74] : memref<1x84xf32, #tpu.memory_space<vmem>>, vector<1x84xf32>
    %89 = arith.addf %87, %88 : vector<1x84xf32>
    %cst_75 = arith.constant 0.000000e+00 : f32
    %90 = vector.broadcast %cst_75 : f32 to vector<1x84xf32>
    %91 = arith.maximumf %89, %90 : vector<1x84xf32>
    %c0_76 = arith.constant 0 : index
    %c0_77 = arith.constant 0 : index
    %92 = vector.load %arg14[%c0_76, %c0_77] : memref<84x10xf32, #tpu.memory_space<vmem>>, vector<84x10xf32>
    %cst_78 = arith.constant dense<0.000000e+00> : vector<1x10xf32>
    %93 = tpu.matmul %91, %92, %cst_78 {dimension_numbers = #tpu.dot_dimension_numbers<[1], [0], [0], [1], [0, 0, 1, 1], [], []>} : vector<1x84xf32>, vector<84x10xf32>, vector<1x10xf32> -> vector<1x10xf32>
    %c0_79 = arith.constant 0 : index
    %c0_80 = arith.constant 0 : index
    %94 = vector.load %arg15[%c0_79, %c0_80] : memref<1x10xf32, #tpu.memory_space<vmem>>, vector<1x10xf32>
    %95 = arith.addf %93, %94 : vector<1x10xf32>
    %c0_81 = arith.constant 0 : index
    %c0_82 = arith.constant 0 : index
    %c0_83 = arith.constant 0 : index
    %96 = vector.load %arg16[%c0_81, %c0_82, %c0_83] : memref<1x1x10xf32, #tpu.memory_space<vmem>>, vector<1x1x10xf32>
    %97 = vector.shape_cast %96 : vector<1x1x10xf32> to vector<1x10xf32>
    %98 = vector.shape_cast %95 : vector<1x10xf32> to vector<1x1x10xf32>
    tpu.vector_store %arg16[%c0_81, %c0_82, %c0_83], %98 {strides = array<i32>} : memref<1x1x10xf32, #tpu.memory_space<vmem>>, vector<1x1x10xf32>,
    return
  }
  func.func @transform_0(%arg0: i32) -> (i32, i32, i32) {
    %c0_i32 = arith.constant 0 : i32
    %c0_i32_0 = arith.constant 0 : i32
    %c0_i32_1 = arith.constant 0 : i32
    return %arg0, %c0_i32, %c0_i32_0 : i32, i32, i32
  }
  func.func @transform_1(%arg0: i32) -> (i32, i32, i32) {
    %c0_i32 = arith.constant 0 : i32
    %c0_i32_0 = arith.constant 0 : i32
    %c0_i32_1 = arith.constant 0 : i32
    %c0_i32_2 = arith.constant 0 : i32
    return %c0_i32, %c0_i32_0, %c0_i32_1 : i32, i32, i32
  }
  func.func @transform_2(%arg0: i32) -> (i32, i32) {
    %c0_i32 = arith.constant 0 : i32
    %c0_i32_0 = arith.constant 0 : i32
    %c0_i32_1 = arith.constant 0 : i32
    return %c0_i32, %c0_i32_0 : i32, i32
  }
  func.func @transform_3(%arg0: i32) -> (i32, i32) {
    %c0_i32 = arith.constant 0 : i32
    %c0_i32_0 = arith.constant 0 : i32
    %c0_i32_1 = arith.constant 0 : i32
    return %c0_i32, %c0_i32_0 : i32, i32
  }
  func.func @transform_4(%arg0: i32) -> (i32, i32) {
    %c0_i32 = arith.constant 0 : i32
    %c0_i32_0 = arith.constant 0 : i32
    %c0_i32_1 = arith.constant 0 : i32
    return %c0_i32, %c0_i32_0 : i32, i32
  }
  func.func @transform_5(%arg0: i32) -> (i32, i32, i32) {
    %c0_i32 = arith.constant 0 : i32
    %c0_i32_0 = arith.constant 0 : i32
    %c0_i32_1 = arith.constant 0 : i32
    %c0_i32_2 = arith.constant 0 : i32
    return %c0_i32, %c0_i32_0, %c0_i32_1 : i32, i32, i32
  }
  func.func @transform_6(%arg0: i32) -> (i32, i32) {
    %c0_i32 = arith.constant 0 : i32
    %c0_i32_0 = arith.constant 0 : i32
    %c0_i32_1 = arith.constant 0 : i32
    return %c0_i32, %c0_i32_0 : i32, i32
  }
  func.func @transform_7(%arg0: i32) -> (i32, i32) {
    %c0_i32 = arith.constant 0 : i32
    %c0_i32_0 = arith.constant 0 : i32
    %c0_i32_1 = arith.constant 0 : i32
    return %c0_i32, %c0_i32_0 : i32, i32
  }
  func.func @transform_8(%arg0: i32) -> (i32, i32) {
    %c0_i32 = arith.constant 0 : i32
    %c0_i32_0 = arith.constant 0 : i32
    %c0_i32_1 = arith.constant 0 : i32
    return %c0_i32, %c0_i32_0 : i32, i32
  }
  func.func @transform_9(%arg0: i32) -> (i32, i32, i32) {
    %c0_i32 = arith.constant 0 : i32
    %c0_i32_0 = arith.constant 0 : i32
    %c0_i32_1 = arith.constant 0 : i32
    %c0_i32_2 = arith.constant 0 : i32
    return %c0_i32, %c0_i32_0, %c0_i32_1 : i32, i32, i32
  }
  func.func @transform_10(%arg0: i32) -> (i32, i32) {
    %c0_i32 = arith.constant 0 : i32
    %c0_i32_0 = arith.constant 0 : i32
    %c0_i32_1 = arith.constant 0 : i32
    return %c0_i32, %c0_i32_0 : i32, i32
  }
  func.func @transform_11(%arg0: i32) -> (i32, i32) {
    %c0_i32 = arith.constant 0 : i32
    %c0_i32_0 = arith.constant 0 : i32
    %c0_i32_1 = arith.constant 0 : i32
    return %c0_i32, %c0_i32_0 : i32, i32
  }
  func.func @transform_12(%arg0: i32) -> (i32, i32) {
    %c0_i32 = arith.constant 0 : i32
    %c0_i32_0 = arith.constant 0 : i32
    %c0_i32_1 = arith.constant 0 : i32
    return %c0_i32, %c0_i32_0 : i32, i32
  }
  func.func @transform_13(%arg0: i32) -> (i32, i32) {
    %c0_i32 = arith.constant 0 : i32
    %c0_i32_0 = arith.constant 0 : i32
    %c0_i32_1 = arith.constant 0 : i32
    return %c0_i32, %c0_i32_0 : i32, i32
  }
  func.func @transform_14(%arg0: i32) -> (i32, i32) {
    %c0_i32 = arith.constant 0 : i32
    %c0_i32_0 = arith.constant 0 : i32
    %c0_i32_1 = arith.constant 0 : i32
    return %c0_i32, %c0_i32_0 : i32, i32
  }
  func.func @transform_15(%arg0: i32) -> (i32, i32, i32) {
    %c0_i32 = arith.constant 0 : i32
    %c0_i32_0 = arith.constant 0 : i32
    %c0_i32_1 = arith.constant 0 : i32
    return %arg0, %c0_i32, %c0_i32_0 : i32, i32, i32
  }
}

</mosaic_0001>

<llo_original>
// kernel: mycnn_forward.1
$region0: #{mycnn_forward.1}
  #allocation0 [shape = 'u32[]', space=smem, size = 0x4, offset = 0x4, fixed_abs, tag = 'smem constant byte address 0x4 - core index']
  #allocation1 [shape = 'u32[144,128]{1,0:T(1,128)}', space=vmem, size = 0x12000, scoped, tag = 'internal scratch']
  %s0 = inlined_call_operand.vmem [shape: f32[2,30,30], index: 0, kind: input, shape index: {}]
  %s1 = inlined_call_operand.vmem [shape: f32[3,30,168], index: 1, kind: input, shape index: {}]
  %s2 = inlined_call_operand.vmem [shape: f32[1,168], index: 2, kind: input, shape index: {}]
  %s3 = inlined_call_operand.vmem [shape: f32[14,28], index: 3, kind: input, shape index: {}]
  %s4 = inlined_call_operand.vmem [shape: f32[168,84], index: 4, kind: input, shape index: {}]
  %s5 = inlined_call_operand.vmem [shape: f32[5,84,160], index: 5, kind: input, shape index: {}]
  %s6 = inlined_call_operand.vmem [shape: f32[1,160], index: 6, kind: input, shape index: {}]
  %s7 = inlined_call_operand.vmem [shape: f32[5,10], index: 7, kind: input, shape index: {}]
  %s8 = inlined_call_operand.vmem [shape: f32[160,80], index: 8, kind: input, shape index: {}]
  %s9 = inlined_call_operand.vmem [shape: f32[5,80,120], index: 9, kind: input, shape index: {}]
  %s10 = inlined_call_operand.vmem [shape: f32[1,120], index: 10, kind: input, shape index: {}]
  %s11 = inlined_call_operand.vmem [shape: f32[120,84], index: 11, kind: input, shape index: {}]
  %s12 = inlined_call_operand.vmem [shape: f32[1,84], index: 12, kind: input, shape index: {}]
  %s13 = inlined_call_operand.vmem [shape: f32[84,10], index: 13, kind: input, shape index: {}]
  %s14 = inlined_call_operand.vmem [shape: f32[1,10], index: 14, kind: input, shape index: {}]
  %s15 = inlined_call_operand.hbm [shape: f32[2,1,10], index: 15, kind: output, shape index: {}]
  %s16 = sld [smem:[#allocation0]]
  $region93: #{mycnn_forward.1} parent=0
    _
  %s18 = ssub.s32 1, %s16
  %s19 = scalar_select 0, %s18, %s16
  $region1: #{mycnn_forward.1} parent=0
    #allocation2 [shape = 'u8[1024]{0}', space=vmem, size = 0x400, scoped, tag = 'output window, operand 0']
    #allocation3 [shape = 's32[2]{0}', space=sflag, size = 0x8, scoped, tag = 'scoped memory for mycnn_forward.1']
    %20 = vsyncpa [#allocation3], 0
    %s21 = scalar_lea.sflag [#allocation3], 1
    %22 = vsyncpa %s21, 0
    loop: start=0, step=1, limit=4
    $region2: #{mycnn_forward.1} parent=1 // loop_pre_header
      _
    $region3: #{mycnn_forward.1} parent=1 // loop_header
      %s24 = sphi 0, %s28
      %p25 = scmp.ge.s32.totalorder %s24, 4
      %s34 = sphi 0, %s36
      %s37 = sphi 0, %s34
      %s38 = sphi 0, %s37
      %s54 = sphi 0, %s38
      %s58 = sphi 0, %s58
      %s60 = sphi 0, %s58
      %s61 = sphi 0, %s60
      %s75 = sphi 0, %s61
      %s79 = sphi 0, %s79
      %s81 = sphi 0, %s79
      %s82 = sphi 0, %s81
      %s96 = sphi 0, %s82
      %s100 = sphi 0, %s100
      %s102 = sphi 0, %s100
      %s103 = sphi 0, %s102
      %s117 = sphi 0, %s103
      %s121 = sphi 0, %s121
      %s123 = sphi 0, %s121
      %s124 = sphi 0, %s123
      %s138 = sphi 0, %s124
      %s142 = sphi 0, %s142
      %s144 = sphi 0, %s142
      %s145 = sphi 0, %s144
      %s159 = sphi 0, %s145
      %s163 = sphi 0, %s163
      %s165 = sphi 0, %s163
      %s166 = sphi 0, %s165
      %s180 = sphi 0, %s166
      %s184 = sphi 0, %s184
      %s186 = sphi 0, %s184
      %s187 = sphi 0, %s186
      %s201 = sphi 0, %s187
      %s205 = sphi 0, %s205
      %s207 = sphi 0, %s205
      %s208 = sphi 0, %s207
      %s222 = sphi 0, %s208
      %s226 = sphi 0, %s226
      %s228 = sphi 0, %s226
      %s229 = sphi 0, %s228
      %s243 = sphi 0, %s229
      %s247 = sphi 0, %s247
      %s249 = sphi 0, %s247
      %s250 = sphi 0, %s249
      %s264 = sphi 0, %s250
      %s268 = sphi 0, %s268
      %s270 = sphi 0, %s268
      %s271 = sphi 0, %s270
      %s285 = sphi 0, %s271
      %s289 = sphi 0, %s289
      %s291 = sphi 0, %s289
      %s292 = sphi 0, %s291
      %s306 = sphi 0, %s292
      %s310 = sphi 0, %s310
      %s312 = sphi 0, %s310
      %s313 = sphi 0, %s312
      %s327 = sphi 0, %s313
      %s331 = sphi 0, %s331
      %s333 = sphi 0, %s331
      %s334 = sphi 0, %s333
      %s348 = sphi 0, %s334
      %s354 = sphi 0, %s356
      %s357 = sphi 0, %s354
      %s358 = sphi 0, %s357
      %s374 = sphi 0, %s358
    $region4: #{mycnn_forward.1} parent=1 // loop_header_branch
      %27 = sbr.rel (%p25) target = $region8
    $region5: #{mycnn_forward.1} parent=1 // loop_body
      %s29 = ssub.s32 %s24, 1
      %s30 = ssub.s32 %s24, 2
      %s31 = sadd.s32 %s24, 1
      %s32 = ssub.s32 %s24, %s31
      %p33 = scmp.eq.s32.totalorder %s32, 0
      %s35 = sadd.s32 %s34, 1
      %s36 = scalar_select %p33, %s34, %s35
      %p39 = pneg %p33
      %p40 = scmp.eq.s32.totalorder %s24, 1
      %p41 = por %p39, %p40
      %p42 = scmp.ne.s32.totalorder %s34, %s37
      %p43 = scmp.eq.s32.totalorder %s24, 0
      %p44 = por %p42, %p43
      %p45 = scmp.ne.s32.totalorder %s34, %s37
      %p46 = scmp.eq.s32.totalorder %s29, 1
      %p47 = por %p45, %p46
      %p48 = scmp.ne.s32.totalorder %s37, %s38
      %p49 = scmp.eq.s32.totalorder %s29, 0
      %p50 = por %p48, %p49
      %p51 = scmp.ne.s32.totalorder %s37, %s38
      %p52 = scmp.eq.s32.totalorder %s30, 1
      %p53 = por %p51, %p52
      %p55 = scmp.ne.s32.totalorder %s38, %s54
      %p56 = scmp.eq.s32.totalorder %s30, 0
      %p57 = por %p55, %p56
      %s59 = sadd.s32 %s58, 1
      %p62 = scmp.eq.s32.totalorder %s24, 1
      %p63 = scmp.ne.s32.totalorder %s58, %s60
      %p64 = scmp.eq.s32.totalorder %s24, 0
      %p65 = por %p63, %p64
      %p66 = scmp.ne.s32.totalorder %s58, %s60
      %p67 = scmp.eq.s32.totalorder %s29, 1
      %p68 = por %p66, %p67
      %p69 = scmp.ne.s32.totalorder %s60, %s61
      %p70 = scmp.eq.s32.totalorder %s29, 0
      %p71 = por %p69, %p70
      %p72 = scmp.ne.s32.totalorder %s60, %s61
      %p73 = scmp.eq.s32.totalorder %s30, 1
      %p74 = por %p72, %p73
      %p76 = scmp.ne.s32.totalorder %s61, %s75
      %p77 = scmp.eq.s32.totalorder %s30, 0
      %p78 = por %p76, %p77
      %s80 = sadd.s32 %s79, 1
      %p83 = scmp.eq.s32.totalorder %s24, 1
      %p84 = scmp.ne.s32.totalorder %s79, %s81
      %p85 = scmp.eq.s32.totalorder %s24, 0
      %p86 = por %p84, %p85
      %p87 = scmp.ne.s32.totalorder %s79, %s81
      %p88 = scmp.eq.s32.totalorder %s29, 1
      %p89 = por %p87, %p88
      %p90 = scmp.ne.s32.totalorder %s81, %s82
      %p91 = scmp.eq.s32.totalorder %s29, 0
      %p92 = por %p90, %p91
      %p93 = scmp.ne.s32.totalorder %s81, %s82
      %p94 = scmp.eq.s32.totalorder %s30, 1
      %p95 = por %p93, %p94
      %p97 = scmp.ne.s32.totalorder %s82, %s96
      %p98 = scmp.eq.s32.totalorder %s30, 0
      %p99 = por %p97, %p98
      %s101 = sadd.s32 %s100, 1
      %p104 = scmp.eq.s32.totalorder %s24, 1
      %p105 = scmp.ne.s32.totalorder %s100, %s102
      %p106 = scmp.eq.s32.totalorder %s24, 0
      %p107 = por %p105, %p106
      %p108 = scmp.ne.s32.totalorder %s100, %s102
      %p109 = scmp.eq.s32.totalorder %s29, 1
      %p110 = por %p108, %p109
      %p111 = scmp.ne.s32.totalorder %s102, %s103
      %p112 = scmp.eq.s32.totalorder %s29, 0
      %p113 = por %p111, %p112
      %p114 = scmp.ne.s32.totalorder %s102, %s103
      %p115 = scmp.eq.s32.totalorder %s30, 1
      %p116 = por %p114, %p115
      %p118 = scmp.ne.s32.totalorder %s103, %s117
      %p119 = scmp.eq.s32.totalorder %s30, 0
      %p120 = por %p118, %p119
      %s122 = sadd.s32 %s121, 1
      %p125 = scmp.eq.s32.totalorder %s24, 1
      %p126 = scmp.ne.s32.totalorder %s121, %s123
      %p127 = scmp.eq.s32.totalorder %s24, 0
      %p128 = por %p126, %p127
      %p129 = scmp.ne.s32.totalorder %s121, %s123
      %p130 = scmp.eq.s32.totalorder %s29, 1
      %p131 = por %p129, %p130
      %p132 = scmp.ne.s32.totalorder %s123, %s124
      %p133 = scmp.eq.s32.totalorder %s29, 0
      %p134 = por %p132, %p133
      %p135 = scmp.ne.s32.totalorder %s123, %s124
      %p136 = scmp.eq.s32.totalorder %s30, 1
      %p137 = por %p135, %p136
      %p139 = scmp.ne.s32.totalorder %s124, %s138
      %p140 = scmp.eq.s32.totalorder %s30, 0
      %p141 = por %p139, %p140
      %s143 = sadd.s32 %s142, 1
      %p146 = scmp.eq.s32.totalorder %s24, 1
      %p147 = scmp.ne.s32.totalorder %s142, %s144
      %p148 = scmp.eq.s32.totalorder %s24, 0
      %p149 = por %p147, %p148
      %p150 = scmp.ne.s32.totalorder %s142, %s144
      %p151 = scmp.eq.s32.totalorder %s29, 1
      %p152 = por %p150, %p151
      %p153 = scmp.ne.s32.totalorder %s144, %s145
      %p154 = scmp.eq.s32.totalorder %s29, 0
      %p155 = por %p153, %p154
      %p156 = scmp.ne.s32.totalorder %s144, %s145
      %p157 = scmp.eq.s32.totalorder %s30, 1
      %p158 = por %p156, %p157
      %p160 = scmp.ne.s32.totalorder %s145, %s159
      %p161 = scmp.eq.s32.totalorder %s30, 0
      %p162 = por %p160, %p161
      %s164 = sadd.s32 %s163, 1
      %p167 = scmp.eq.s32.totalorder %s24, 1
      %p168 = scmp.ne.s32.totalorder %s163, %s165
      %p169 = scmp.eq.s32.totalorder %s24, 0
      %p170 = por %p168, %p169
      %p171 = scmp.ne.s32.totalorder %s163, %s165
      %p172 = scmp.eq.s32.totalorder %s29, 1
      %p173 = por %p171, %p172
      %p174 = scmp.ne.s32.totalorder %s165, %s166
      %p175 = scmp.eq.s32.totalorder %s29, 0
      %p176 = por %p174, %p175
      %p177 = scmp.ne.s32.totalorder %s165, %s166
      %p178 = scmp.eq.s32.totalorder %s30, 1
      %p179 = por %p177, %p178
      %p181 = scmp.ne.s32.totalorder %s166, %s180
      %p182 = scmp.eq.s32.totalorder %s30, 0
      %p183 = por %p181, %p182
      %s185 = sadd.s32 %s184, 1
      %p188 = scmp.eq.s32.totalorder %s24, 1
      %p189 = scmp.ne.s32.totalorder %s184, %s186
      %p190 = scmp.eq.s32.totalorder %s24, 0
      %p191 = por %p189, %p190
      %p192 = scmp.ne.s32.totalorder %s184, %s186
      %p193 = scmp.eq.s32.totalorder %s29, 1
      %p194 = por %p192, %p193
      %p195 = scmp.ne.s32.totalorder %s186, %s187
      %p196 = scmp.eq.s32.totalorder %s29, 0
      %p197 = por %p195, %p196
      %p198 = scmp.ne.s32.totalorder %s186, %s187
      %p199 = scmp.eq.s32.totalorder %s30, 1
      %p200 = por %p198, %p199
      %p202 = scmp.ne.s32.totalorder %s187, %s201
      %p203 = scmp.eq.s32.totalorder %s30, 0
      %p204 = por %p202, %p203
      %s206 = sadd.s32 %s205, 1
      %p209 = scmp.eq.s32.totalorder %s24, 1
      %p210 = scmp.ne.s32.totalorder %s205, %s207
      %p211 = scmp.eq.s32.totalorder %s24, 0
      %p212 = por %p210, %p211
      %p213 = scmp.ne.s32.totalorder %s205, %s207
      %p214 = scmp.eq.s32.totalorder %s29, 1
      %p215 = por %p213, %p214
      %p216 = scmp.ne.s32.totalorder %s207, %s208
      %p217 = scmp.eq.s32.totalorder %s29, 0
      %p218 = por %p216, %p217
      %p219 = scmp.ne.s32.totalorder %s207, %s208
      %p220 = scmp.eq.s32.totalorder %s30, 1
      %p221 = por %p219, %p220
      %p223 = scmp.ne.s32.totalorder %s208, %s222
      %p224 = scmp.eq.s32.totalorder %s30, 0
      %p225 = por %p223, %p224
      %s227 = sadd.s32 %s226, 1
      %p230 = scmp.eq.s32.totalorder %s24, 1
      %p231 = scmp.ne.s32.totalorder %s226, %s228
      %p232 = scmp.eq.s32.totalorder %s24, 0
      %p233 = por %p231, %p232
      %p234 = scmp.ne.s32.totalorder %s226, %s228
      %p235 = scmp.eq.s32.totalorder %s29, 1
      %p236 = por %p234, %p235
      %p237 = scmp.ne.s32.totalorder %s228, %s229
      %p238 = scmp.eq.s32.totalorder %s29, 0
      %p239 = por %p237, %p238
      %p240 = scmp.ne.s32.totalorder %s228, %s229
      %p241 = scmp.eq.s32.totalorder %s30, 1
      %p242 = por %p240, %p241
      %p244 = scmp.ne.s32.totalorder %s229, %s243
      %p245 = scmp.eq.s32.totalorder %s30, 0
      %p246 = por %p244, %p245
      %s248 = sadd.s32 %s247, 1
      %p251 = scmp.eq.s32.totalorder %s24, 1
      %p252 = scmp.ne.s32.totalorder %s247, %s249
      %p253 = scmp.eq.s32.totalorder %s24, 0
      %p254 = por %p252, %p253
      %p255 = scmp.ne.s32.totalorder %s247, %s249
      %p256 = scmp.eq.s32.totalorder %s29, 1
      %p257 = por %p255, %p256
      %p258 = scmp.ne.s32.totalorder %s249, %s250
      %p259 = scmp.eq.s32.totalorder %s29, 0
      %p260 = por %p258, %p259
      %p261 = scmp.ne.s32.totalorder %s249, %s250
      %p262 = scmp.eq.s32.totalorder %s30, 1
      %p263 = por %p261, %p262
      %p265 = scmp.ne.s32.totalorder %s250, %s264
      %p266 = scmp.eq.s32.totalorder %s30, 0
      %p267 = por %p265, %p266
      %s269 = sadd.s32 %s268, 1
      %p272 = scmp.eq.s32.totalorder %s24, 1
      %p273 = scmp.ne.s32.totalorder %s268, %s270
      %p274 = scmp.eq.s32.totalorder %s24, 0
      %p275 = por %p273, %p274
      %p276 = scmp.ne.s32.totalorder %s268, %s270
      %p277 = scmp.eq.s32.totalorder %s29, 1
      %p278 = por %p276, %p277
      %p279 = scmp.ne.s32.totalorder %s270, %s271
      %p280 = scmp.eq.s32.totalorder %s29, 0
      %p281 = por %p279, %p280
      %p282 = scmp.ne.s32.totalorder %s270, %s271
      %p283 = scmp.eq.s32.totalorder %s30, 1
      %p284 = por %p282, %p283
      %p286 = scmp.ne.s32.totalorder %s271, %s285
      %p287 = scmp.eq.s32.totalorder %s30, 0
      %p288 = por %p286, %p287
      %s290 = sadd.s32 %s289, 1
      %p293 = scmp.eq.s32.totalorder %s24, 1
      %p294 = scmp.ne.s32.totalorder %s289, %s291
      %p295 = scmp.eq.s32.totalorder %s24, 0
      %p296 = por %p294, %p295
      %p297 = scmp.ne.s32.totalorder %s289, %s291
      %p298 = scmp.eq.s32.totalorder %s29, 1
      %p299 = por %p297, %p298
      %p300 = scmp.ne.s32.totalorder %s291, %s292
      %p301 = scmp.eq.s32.totalorder %s29, 0
      %p302 = por %p300, %p301
      %p303 = scmp.ne.s32.totalorder %s291, %s292
      %p304 = scmp.eq.s32.totalorder %s30, 1
      %p305 = por %p303, %p304
      %p307 = scmp.ne.s32.totalorder %s292, %s306
      %p308 = scmp.eq.s32.totalorder %s30, 0
      %p309 = por %p307, %p308
      %s311 = sadd.s32 %s310, 1
      %p314 = scmp.eq.s32.totalorder %s24, 1
      %p315 = scmp.ne.s32.totalorder %s310, %s312
      %p316 = scmp.eq.s32.totalorder %s24, 0
      %p317 = por %p315, %p316
      %p318 = scmp.ne.s32.totalorder %s310, %s312
      %p319 = scmp.eq.s32.totalorder %s29, 1
      %p320 = por %p318, %p319
      %p321 = scmp.ne.s32.totalorder %s312, %s313
      %p322 = scmp.eq.s32.totalorder %s29, 0
      %p323 = por %p321, %p322
      %p324 = scmp.ne.s32.totalorder %s312, %s313
      %p325 = scmp.eq.s32.totalorder %s30, 1
      %p326 = por %p324, %p325
      %p328 = scmp.ne.s32.totalorder %s313, %s327
      %p329 = scmp.eq.s32.totalorder %s30, 0
      %p330 = por %p328, %p329
      %s332 = sadd.s32 %s331, 1
      %p335 = scmp.eq.s32.totalorder %s24, 1
      %p336 = scmp.ne.s32.totalorder %s331, %s333
      %p337 = scmp.eq.s32.totalorder %s24, 0
      %p338 = por %p336, %p337
      %p339 = scmp.ne.s32.totalorder %s331, %s333
      %p340 = scmp.eq.s32.totalorder %s29, 1
      %p341 = por %p339, %p340
      %p342 = scmp.ne.s32.totalorder %s333, %s334
      %p343 = scmp.eq.s32.totalorder %s29, 0
      %p344 = por %p342, %p343
      %p345 = scmp.ne.s32.totalorder %s333, %s334
      %p346 = scmp.eq.s32.totalorder %s30, 1
      %p347 = por %p345, %p346
      %p349 = scmp.ne.s32.totalorder %s334, %s348
      %p350 = scmp.eq.s32.totalorder %s30, 0
      %p351 = por %p349, %p350
      %s352 = ssub.s32 %s24, %s31
      %p353 = scmp.eq.s32.totalorder %s352, 0
      %s355 = sadd.s32 %s354, 1
      %s356 = scalar_select %p353, %s354, %s355
      %p359 = pneg %p353
      %p360 = scmp.eq.s32.totalorder %s24, 1
      %p361 = por %p359, %p360
      %p362 = scmp.ne.s32.totalorder %s354, %s357
      %p363 = scmp.eq.s32.totalorder %s24, 0
      %p364 = por %p362, %p363
      %p365 = scmp.ne.s32.totalorder %s354, %s357
      %p366 = scmp.eq.s32.totalorder %s29, 1
      %p367 = por %p365, %p366
      %p368 = scmp.ne.s32.totalorder %s357, %s358
      %p369 = scmp.eq.s32.totalorder %s29, 0
      %p370 = por %p368, %p369
      %p371 = scmp.ne.s32.totalorder %s357, %s358
      %p372 = scmp.eq.s32.totalorder %s30, 1
      %p373 = por %p371, %p372
      %p375 = scmp.ne.s32.totalorder %s358, %s374
      %p376 = scmp.eq.s32.totalorder %s30, 0
      %p377 = por %p375, %p376
      %p378 = scmp.le.s32.totalorder 1, %s24
      %p379 = scmp.lt.s32.totalorder %s24, 3
      %p380 = pnand %p378, %p379
      %p381 = pneg %p380
      // Predicated region
      $region9: #{mycnn_forward.1} parent=5 // pred_check
        _
      $region10: #{mycnn_forward.1} parent=5 // pred_check_branch
        %383 = sbr.rel (%p380) target = $region12
      $region11: #{mycnn_forward.1} parent=5 // pred_region
        %s384 = ssub.s32 %s24, 1
        // Predicated region
        $region13: #{mycnn_forward.1} parent=11 // pred_check
          %p385 = pneg %p71
        $region14: #{mycnn_forward.1} parent=11 // pred_check_branch
          %387 = sbr.rel (%p385) target = $region16
        $region15: #{mycnn_forward.1} parent=11 // pred_region
          _
        $region16: #{mycnn_forward.1} parent=11 // pred_fallthru
          _
        // Predicated region
        $region17: #{mycnn_forward.1} parent=11 // pred_check
          %p388 = pneg %p92
        $region18: #{mycnn_forward.1} parent=11 // pred_check_branch
          %390 = sbr.rel (%p388) target = $region20
        $region19: #{mycnn_forward.1} parent=11 // pred_region
          _
        $region20: #{mycnn_forward.1} parent=11 // pred_fallthru
          _
        // Predicated region
        $region21: #{mycnn_forward.1} parent=11 // pred_check
          %p391 = pneg %p113
        $region22: #{mycnn_forward.1} parent=11 // pred_check_branch
          %393 = sbr.rel (%p391) target = $region24
        $region23: #{mycnn_forward.1} parent=11 // pred_region
          _
        $region24: #{mycnn_forward.1} parent=11 // pred_fallthru
          _
        // Predicated region
        $region25: #{mycnn_forward.1} parent=11 // pred_check
          %p394 = pneg %p134
        $region26: #{mycnn_forward.1} parent=11 // pred_check_branch
          %396 = sbr.rel (%p394) target = $region28
        $region27: #{mycnn_forward.1} parent=11 // pred_region
          _
        $region28: #{mycnn_forward.1} parent=11 // pred_fallthru
          _
        // Predicated region
        $region29: #{mycnn_forward.1} parent=11 // pred_check
          %p397 = pneg %p155
        $region30: #{mycnn_forward.1} parent=11 // pred_check_branch
          %399 = sbr.rel (%p397) target = $region32
        $region31: #{mycnn_forward.1} parent=11 // pred_region
          _
        $region32: #{mycnn_forward.1} parent=11 // pred_fallthru
          _
        // Predicated region
        $region33: #{mycnn_forward.1} parent=11 // pred_check
          %p400 = pneg %p176
        $region34: #{mycnn_forward.1} parent=11 // pred_check_branch
          %402 = sbr.rel (%p400) target = $region36
        $region35: #{mycnn_forward.1} parent=11 // pred_region
          _
        $region36: #{mycnn_forward.1} parent=11 // pred_fallthru
          _
        // Predicated region
        $region37: #{mycnn_forward.1} parent=11 // pred_check
          %p403 = pneg %p197
        $region38: #{mycnn_forward.1} parent=11 // pred_check_branch
          %405 = sbr.rel (%p403) target = $region40
        $region39: #{mycnn_forward.1} parent=11 // pred_region
          _
        $region40: #{mycnn_forward.1} parent=11 // pred_fallthru
          _
        // Predicated region
        $region41: #{mycnn_forward.1} parent=11 // pred_check
          %p406 = pneg %p218
        $region42: #{mycnn_forward.1} parent=11 // pred_check_branch
          %408 = sbr.rel (%p406) target = $region44
        $region43: #{mycnn_forward.1} parent=11 // pred_region
          _
        $region44: #{mycnn_forward.1} parent=11 // pred_fallthru
          _
        // Predicated region
        $region45: #{mycnn_forward.1} parent=11 // pred_check
          %p409 = pneg %p239
        $region46: #{mycnn_forward.1} parent=11 // pred_check_branch
          %411 = sbr.rel (%p409) target = $region48
        $region47: #{mycnn_forward.1} parent=11 // pred_region
          _
        $region48: #{mycnn_forward.1} parent=11 // pred_fallthru
          _
        // Predicated region
        $region49: #{mycnn_forward.1} parent=11 // pred_check
          %p412 = pneg %p260
        $region50: #{mycnn_forward.1} parent=11 // pred_check_branch
          %414 = sbr.rel (%p412) target = $region52
        $region51: #{mycnn_forward.1} parent=11 // pred_region
          _
        $region52: #{mycnn_forward.1} parent=11 // pred_fallthru
          _
        // Predicated region
        $region53: #{mycnn_forward.1} parent=11 // pred_check
          %p415 = pneg %p281
        $region54: #{mycnn_forward.1} parent=11 // pred_check_branch
          %417 = sbr.rel (%p415) target = $region56
        $region55: #{mycnn_forward.1} parent=11 // pred_region
          _
        $region56: #{mycnn_forward.1} parent=11 // pred_fallthru
          _
        // Predicated region
        $region57: #{mycnn_forward.1} parent=11 // pred_check
          %p418 = pneg %p302
        $region58: #{mycnn_forward.1} parent=11 // pred_check_branch
          %420 = sbr.rel (%p418) target = $region60
        $region59: #{mycnn_forward.1} parent=11 // pred_region
          _
        $region60: #{mycnn_forward.1} parent=11 // pred_fallthru
          _
        // Predicated region
        $region61: #{mycnn_forward.1} parent=11 // pred_check
          %p421 = pneg %p323
        $region62: #{mycnn_forward.1} parent=11 // pred_check_branch
          %423 = sbr.rel (%p421) target = $region64
        $region63: #{mycnn_forward.1} parent=11 // pred_region
          _
        $region64: #{mycnn_forward.1} parent=11 // pred_fallthru
          _
        // Predicated region
        $region65: #{mycnn_forward.1} parent=11 // pred_check
          %p424 = pneg %p344
        $region66: #{mycnn_forward.1} parent=11 // pred_check_branch
          %426 = sbr.rel (%p424) target = $region68
        $region67: #{mycnn_forward.1} parent=11 // pred_region
          _
        $region68: #{mycnn_forward.1} parent=11 // pred_fallthru
          _
      $region12: #{mycnn_forward.1} parent=5 // pred_fallthru
        _
      %p427 = scmp.lt.s32.totalorder %s24, 2
      // Predicated region
      $region69: #{mycnn_forward.1} parent=5 // pred_check
        %p428 = pneg %p427
      $region70: #{mycnn_forward.1} parent=5 // pred_check_branch
        %430 = sbr.rel (%p428) target = $region72
      $region71: #{mycnn_forward.1} parent=5 // pred_region
        // Predicated region
        $region73: #{mycnn_forward.1} parent=71 // pred_check
          %p431 = pneg %p44
        $region74: #{mycnn_forward.1} parent=71 // pred_check_branch
          %433 = sbr.rel (%p431) target = $region76
        $region75: #{mycnn_forward.1} parent=71 // pred_region
          %p434 = scmp.lt.s32.totalorder %s24, 1
          %s435 = scalar_select %p434, %s24, 1
          %s436 = smul.addr %s435, 4
          %s437 = smul.addr %s436, 8
          %s438 = scalar_lea.vmem %s0, %s437
        $region76: #{mycnn_forward.1} parent=71 // pred_fallthru
          _
      $region72: #{mycnn_forward.1} parent=5 // pred_fallthru
        _
      %p439 = scmp.le.s32.totalorder 1, %s24
      %p440 = scmp.lt.s32.totalorder %s24, 3
      %p441 = pnand %p439, %p440
      %p442 = pneg %p441
      // Predicated region
      $region77: #{mycnn_forward.1} parent=5 // pred_check
        _
      $region78: #{mycnn_forward.1} parent=5 // pred_check_branch
        %444 = sbr.rel (%p441) target = $region80
      $region79: #{mycnn_forward.1} parent=5 // pred_region
        %s445 = ssub.s32 %s24, 1
        %p446 = scmp.lt.s32.totalorder %s29, 1
        %s447 = scalar_select %p446, %s29, 1
        %s448 = smul.addr %s447, 4
        %s449 = smul.addr %s448, 8
        %s450 = scalar_lea.vmem %s0, %s449
        %p451 = pneg %p50
        %p452 = pneg %p47
        %p453 = pneg %p71
        %p454 = pneg %p68
        %p455 = pneg %p92
        %p456 = pneg %p89
        %p457 = pneg %p113
        %p458 = pneg %p110
        %p459 = pneg %p134
        %p460 = pneg %p131
        %p461 = pneg %p155
        %p462 = pneg %p152
        %p463 = pneg %p176
        %p464 = pneg %p173
        %p465 = pneg %p197
        %p466 = pneg %p194
        %p467 = pneg %p218
        %p468 = pneg %p215
        %p469 = pneg %p239
        %p470 = pneg %p236
        %p471 = pneg %p260
        %p472 = pneg %p257
        %p473 = pneg %p281
        %p474 = pneg %p278
        %p475 = pneg %p302
        %p476 = pneg %p299
        %p477 = pneg %p323
        %p478 = pneg %p320
        %p479 = pneg %p344
        %p480 = pneg %p341
        %p481 = pneg %p370
        %p482 = pneg %p367
        %s483 = sand.u32 %s357, 1
        %s484 = scalar_lea.sflag [#allocation3], %s483
        %s485 = sand.u32 %s357, 1
        %s486 = scalar_lea.vmem [#allocation2], %s485
        %p487 = scmp.lt.s32.totalorder %s29, 1
        %s488 = scalar_select %p487, %s29, 1
        %s489 = smul.addr %s488, 4
        %s490 = smul.addr %s489, 8
        %s491 = scalar_lea.vmem %s0, %s490
        %v492 = vld [vmem:[%s491] sm:$0xff]
        %v493 = vld [vmem:[%s491 + $0x8] sm:$0xff]
        %v494 = vld [vmem:[%s491 + $0x10] sm:$0xff]
        %v495 = vld [vmem:[%s491 + $0x18] sm:$0x3f]
        %v496 = vld [vmem:[%s1] sm:$0xff]
        %v497 = vld [vmem:[%s1 + $0x8] sm:$0xff]
        %v498 = vld [vmem:[%s1 + $0x10] sm:$0xff]
        %v499 = vld [vmem:[%s1 + $0x18] sm:$0xff]
        %v500 = vld [vmem:[%s1 + $0x20] sm:$0xff]
        %v501 = vld [vmem:[%s1 + $0x28] sm:$0xff]
        %v502 = vld [vmem:[%s1 + $0x30] sm:$0x3f]
        %v503 = vld [vmem:[%s1 + $0x38] sm:$0x3f]
        %s504 = scalar_lea.vmem %s1, 64
        %v505 = vld [vmem:[%s504] sm:$0xff]
        %v506 = vld [vmem:[%s504 + $0x8] sm:$0xff]
        %v507 = vld [vmem:[%s504 + $0x10] sm:$0xff]
        %v508 = vld [vmem:[%s504 + $0x18] sm:$0xff]
        %v509 = vld [vmem:[%s504 + $0x20] sm:$0xff]
        %v510 = vld [vmem:[%s504 + $0x28] sm:$0xff]
        %v511 = vld [vmem:[%s504 + $0x30] sm:$0x3f]
        %v512 = vld [vmem:[%s504 + $0x38] sm:$0x3f]
        %vm517 = vcmask 1046528
        %v518 = vrot.slane %v492, 1
        %v519 = vrot.slane %v493, 1
        %v520 = vsel %vm517, %v518, %v519
        %v521 = vrot.slane %v494, 1
        %v522 = vsel %vm517, %v519, %v521
        %v523 = vrot.slane %v495, 1
        %v524 = vsel %vm517, %v521, %v523
        %vm525 = vcmask 244736
        %v526 = vsel %vm525, %v520, 0
        %v528 = vsel %vm525, %v522, 0
        %v530 = vsel %vm525, %v524, 0
        %v532 = vsel %vm525, %v523, 0
        %vm534 = vcmask 1045504
        %v536 = vsel %vm534, %v511, 0
        %v539 = vsel %vm534, %v512, 0
        %541 = vmatprep.subr.mxu0 %v506
        %542 = vmatpush1.msra.mxu0 %v505
        %543 = vmatprep.subr.mxu0 %v508
        %544 = vmatpush1.msra.mxu0 %v507
        %545 = vmatprep.subr.mxu0 %v510
        %546 = vmatpush1.msra.mxu0 %v509
        %547 = vmatprep.subr.mxu0 %v539
        %548 = vmatpush1.msra.mxu0 %v536
        %549 = vmatprep.subr.mxu0 0.0
        %550 = vmatpush1.msra.mxu0 0.0
        %551 = vmatprep.subr.mxu0 0.0
        %552 = vmatpush1.msra.mxu0 0.0
        %553 = vmatprep.subr.mxu0 0.0
        %554 = vmatpush1.msra.mxu0 0.0
        %555 = vmatprep.subr.mxu0 0.0
        %556 = vmatpush1.msra.mxu0 0.0
        %557 = vmatprep.subr.mxu0 0.0
        %558 = vmatpush1.msra.mxu0 0.0
        %559 = vmatprep.subr.mxu0 0.0
        %560 = vmatpush1.msra.mxu0 0.0
        %561 = vmatprep.subr.mxu0 0.0
        %562 = vmatpush1.msra.mxu0 0.0
        %563 = vmatprep.subr.mxu0 0.0
        %564 = vmatpush1.msra.mxu0 0.0
        %565 = vmatprep.subr.mxu0 0.0
        %566 = vmatpush1.msra.mxu0 0.0
        %567 = vmatprep.subr.mxu0 0.0
        %568 = vmatpush1.msra.mxu0 0.0
        %569 = vmatprep.subr.mxu0 0.0
        %570 = vmatpush1.msra.mxu0 0.0
        %571 = vmatprep.subr.mxu0 0.0
        %572 = vmatpush1.msra.mxu0 0.0
        %573 = vmatprep.subr.mxu0 0.0
        %574 = vmatpush1.msra.mxu0 0.0
        %575 = vmatprep.subr.mxu0 0.0
        %576 = vmatpush1.msra.mxu0 0.0
        %577 = vmatprep.subr.mxu0 0.0
        %578 = vmatpush1.msra.mxu0 0.0
        %579 = vmatprep.subr.mxu0 0.0
        %580 = vmatpush1.msra.mxu0 0.0
        %581 = vmatprep.subr.mxu0 0.0
        %582 = vmatpush1.msra.mxu0 0.0
        %583 = vmatprep.subr.mxu0 0.0
        %584 = vmatpush1.msra.mxu0 0.0
        %585 = vmatprep.subr.mxu0 0.0
        %586 = vmatpush1.msra.mxu0 0.0
        %587 = vmatprep.subr.mxu0 0.0
        %588 = vmatpush1.msra.mxu0 0.0
        %589 = vmatprep.subr.mxu0 0.0
        %590 = vmatpush1.msra.mxu0 0.0
        %591 = vmatprep.subr.mxu0 0.0
        %592 = vmatpush1.msra.mxu0 0.0
        %593 = vmatprep.subr.mxu0 0.0
        %594 = vmatpush1.msra.mxu0 0.0
        %595 = vmatprep.subr.mxu0 0.0
        %596 = vmatpush1.msra.mxu0 0.0
        %597 = vmatprep.subr.mxu0 0.0
        %598 = vmatpush1.msra.mxu0 0.0
        %599 = vmatprep.subr.mxu0 0.0
        %600 = vmatpush1.msra.mxu0 0.0
        %601 = vmatprep.subr.mxu0 0.0
        %602 = vmatpush1.msra.mxu0 0.0
        %603 = vmatprep.subr.mxu0 0.0
        %604 = vmatpush1.msra.mxu0 0.0
        %605 = vmatprep.mubr.f32.mxu0 0.0
        %606 = vmatmul.mubr.f32.gmra.mrb[0].mxu0 %v526
        %v607 = vpop.f32.mrb[0].mxu0
        %v608 = vadd.f32 0.0, %v607
        %v609 = vpop.f32.mrb[0].mxu0
        %v610 = vadd.f32 0.0, %v609
        %611 = vmatprep.mubr.f32.mxu0 0.0
        %612 = vmatmul.mubr.f32.gmra.mrb[0].mxu0 %v528
        %v613 = vpop.f32.mrb[0].mxu0
        %v614 = vadd.f32 0.0, %v613
        %v615 = vpop.f32.mrb[0].mxu0
        %v616 = vadd.f32 0.0, %v615
        %617 = vmatprep.mubr.f32.mxu0 0.0
        %618 = vmatmul.mubr.f32.gmra.mrb[0].mxu0 %v530
        %v619 = vpop.f32.mrb[0].mxu0
        %v620 = vadd.f32 0.0, %v619
        %v621 = vpop.f32.mrb[0].mxu0
        %v622 = vadd.f32 0.0, %v621
        %623 = vmatprep.mubr.f32.mxu0 0.0
        %624 = vmatmul.mubr.f32.gmra.mrb[0].mxu0 %v532
        %v625 = vpop.f32.mrb[0].mxu0
        %v626 = vadd.f32 0.0, %v625
        %v627 = vpop.f32.mrb[0].mxu0
        %v628 = vadd.f32 0.0, %v627
        %629 = vdwg.mxu0
        %v630 = vsel %vm525, %v492, 0
        %v632 = vsel %vm525, %v493, 0
        %v634 = vsel %vm525, %v494, 0
        %v636 = vsel %vm525, %v495, 0
        %v639 = vsel %vm534, %v502, 0
        %v642 = vsel %vm534, %v503, 0
        %644 = vmatprep.subr.mxu0 %v497
        %645 = vmatpush1.msra.mxu0 %v496
        %646 = vmatprep.subr.mxu0 %v499
        %647 = vmatpush1.msra.mxu0 %v498
        %648 = vmatprep.subr.mxu0 %v501
        %649 = vmatpush1.msra.mxu0 %v500
        %650 = vmatprep.subr.mxu0 %v642
        %651 = vmatpush1.msra.mxu0 %v639
        %652 = vmatprep.subr.mxu0 0.0
        %653 = vmatpush1.msra.mxu0 0.0
        %654 = vmatprep.subr.mxu0 0.0
        %655 = vmatpush1.msra.mxu0 0.0
        %656 = vmatprep.subr.mxu0 0.0
        %657 = vmatpush1.msra.mxu0 0.0
        %658 = vmatprep.subr.mxu0 0.0
        %659 = vmatpush1.msra.mxu0 0.0
        %660 = vmatprep.subr.mxu0 0.0
        %661 = vmatpush1.msra.mxu0 0.0
        %662 = vmatprep.subr.mxu0 0.0
        %663 = vmatpush1.msra.mxu0 0.0
        %664 = vmatprep.subr.mxu0 0.0
        %665 = vmatpush1.msra.mxu0 0.0
        %666 = vmatprep.subr.mxu0 0.0
        %667 = vmatpush1.msra.mxu0 0.0
        %668 = vmatprep.subr.mxu0 0.0
        %669 = vmatpush1.msra.mxu0 0.0
        %670 = vmatprep.subr.mxu0 0.0
        %671 = vmatpush1.msra.mxu0 0.0
        %672 = vmatprep.subr.mxu0 0.0
        %673 = vmatpush1.msra.mxu0 0.0
        %674 = vmatprep.subr.mxu0 0.0
        %675 = vmatpush1.msra.mxu0 0.0
        %676 = vmatprep.subr.mxu0 0.0
        %677 = vmatpush1.msra.mxu0 0.0
        %678 = vmatprep.subr.mxu0 0.0
        %679 = vmatpush1.msra.mxu0 0.0
        %680 = vmatprep.subr.mxu0 0.0
        %681 = vmatpush1.msra.mxu0 0.0
        %682 = vmatprep.subr.mxu0 0.0
        %683 = vmatpush1.msra.mxu0 0.0
        %684 = vmatprep.subr.mxu0 0.0
        %685 = vmatpush1.msra.mxu0 0.0
        %686 = vmatprep.subr.mxu0 0.0
        %687 = vmatpush1.msra.mxu0 0.0
        %688 = vmatprep.subr.mxu0 0.0
        %689 = vmatpush1.msra.mxu0 0.0
        %690 = vmatprep.subr.mxu0 0.0
        %691 = vmatpush1.msra.mxu0 0.0
        %692 = vmatprep.subr.mxu0 0.0
        %693 = vmatpush1.msra.mxu0 0.0
        %694 = vmatprep.subr.mxu0 0.0
        %695 = vmatpush1.msra.mxu0 0.0
        %696 = vmatprep.subr.mxu0 0.0
        %697 = vmatpush1.msra.mxu0 0.0
        %698 = vmatprep.subr.mxu0 0.0
        %699 = vmatpush1.msra.mxu0 0.0
        %700 = vmatprep.subr.mxu0 0.0
        %701 = vmatpush1.msra.mxu0 0.0
        %702 = vmatprep.subr.mxu0 0.0
        %703 = vmatpush1.msra.mxu0 0.0
        %704 = vmatprep.subr.mxu0 0.0
        %705 = vmatpush1.msra.mxu0 0.0
        %706 = vmatprep.subr.mxu0 0.0
        %707 = vmatpush1.msra.mxu0 0.0
        %708 = vmatprep.mubr.f32.mxu0 0.0
        %709 = vmatmul.mubr.f32.gmra.mrb[0].mxu0 %v630
        %v710 = vpop.f32.mrb[0].mxu0
        %v711 = vadd.f32 %v608, %v710
        %v712 = vpop.f32.mrb[0].mxu0
        %v713 = vadd.f32 %v610, %v712
        %714 = vmatprep.mubr.f32.mxu0 0.0
        %715 = vmatmul.mubr.f32.gmra.mrb[0].mxu0 %v632
        %v716 = vpop.f32.mrb[0].mxu0
        %v717 = vadd.f32 %v614, %v716
        %v718 = vpop.f32.mrb[0].mxu0
        %v719 = vadd.f32 %v616, %v718
        %720 = vmatprep.mubr.f32.mxu0 0.0
        %721 = vmatmul.mubr.f32.gmra.mrb[0].mxu0 %v634
        %v722 = vpop.f32.mrb[0].mxu0
        %v723 = vadd.f32 %v620, %v722
        %v724 = vpop.f32.mrb[0].mxu0
        %v725 = vadd.f32 %v622, %v724
        %726 = vmatprep.mubr.f32.mxu0 0.0
        %727 = vmatmul.mubr.f32.gmra.mrb[0].mxu0 %v636
        %v728 = vpop.f32.mrb[0].mxu0
        %v729 = vadd.f32 %v626, %v728
        %v730 = vpop.f32.mrb[0].mxu0
        %v731 = vadd.f32 %v628, %v730
        %732 = vdwg.mxu0
        %s733 = scalar_lea.vmem %s1, 128
        %v734 = vld [vmem:[%s733] sm:$0xff]
        %v735 = vld [vmem:[%s733 + $0x8] sm:$0xff]
        %v736 = vld [vmem:[%s733 + $0x10] sm:$0xff]
        %v737 = vld [vmem:[%s733 + $0x18] sm:$0xff]
        %v738 = vld [vmem:[%s733 + $0x20] sm:$0xff]
        %v739 = vld [vmem:[%s733 + $0x28] sm:$0xff]
        %v740 = vld [vmem:[%s733 + $0x30] sm:$0x3f]
        %v741 = vld [vmem:[%s733 + $0x38] sm:$0x3f]
        %v742 = vrot.slane %v492, 2
        %v743 = vrot.slane %v493, 2
        %v744 = vsel %vm534, %v742, %v743
        %v745 = vrot.slane %v494, 2
        %v746 = vsel %vm534, %v743, %v745
        %v747 = vrot.slane %v495, 2
        %v748 = vsel %vm534, %v745, %v747
        %v749 = vsel %vm525, %v744, 0
        %v751 = vsel %vm525, %v746, 0
        %v753 = vsel %vm525, %v748, 0
        %v755 = vsel %vm525, %v747, 0
        %v758 = vsel %vm534, %v740, 0
        %v761 = vsel %vm534, %v741, 0
        %763 = vmatprep.subr.mxu0 %v735
        %764 = vmatpush1.msra.mxu0 %v734
        %765 = vmatprep.subr.mxu0 %v737
        %766 = vmatpush1.msra.mxu0 %v736
        %767 = vmatprep.subr.mxu0 %v739
        %768 = vmatpush1.msra.mxu0 %v738
        %769 = vmatprep.subr.mxu0 %v761
        %770 = vmatpush1.msra.mxu0 %v758
        %771 = vmatprep.subr.mxu0 0.0
        %772 = vmatpush1.msra.mxu0 0.0
        %773 = vmatprep.subr.mxu0 0.0
        %774 = vmatpush1.msra.mxu0 0.0
        %775 = vmatprep.subr.mxu0 0.0
        %776 = vmatpush1.msra.mxu0 0.0
        %777 = vmatprep.subr.mxu0 0.0
        %778 = vmatpush1.msra.mxu0 0.0
        %779 = vmatprep.subr.mxu0 0.0
        %780 = vmatpush1.msra.mxu0 0.0
        %781 = vmatprep.subr.mxu0 0.0
        %782 = vmatpush1.msra.mxu0 0.0
        %783 = vmatprep.subr.mxu0 0.0
        %784 = vmatpush1.msra.mxu0 0.0
        %785 = vmatprep.subr.mxu0 0.0
        %786 = vmatpush1.msra.mxu0 0.0
        %787 = vmatprep.subr.mxu0 0.0
        %788 = vmatpush1.msra.mxu0 0.0
        %789 = vmatprep.subr.mxu0 0.0
        %790 = vmatpush1.msra.mxu0 0.0
        %791 = vmatprep.subr.mxu0 0.0
        %792 = vmatpush1.msra.mxu0 0.0
        %793 = vmatprep.subr.mxu0 0.0
        %794 = vmatpush1.msra.mxu0 0.0
        %795 = vmatprep.subr.mxu0 0.0
        %796 = vmatpush1.msra.mxu0 0.0
        %797 = vmatprep.subr.mxu0 0.0
        %798 = vmatpush1.msra.mxu0 0.0
        %799 = vmatprep.subr.mxu0 0.0
        %800 = vmatpush1.msra.mxu0 0.0
        %801 = vmatprep.subr.mxu0 0.0
        %802 = vmatpush1.msra.mxu0 0.0
        %803 = vmatprep.subr.mxu0 0.0
        %804 = vmatpush1.msra.mxu0 0.0
        %805 = vmatprep.subr.mxu0 0.0
        %806 = vmatpush1.msra.mxu0 0.0
        %807 = vmatprep.subr.mxu0 0.0
        %808 = vmatpush1.msra.mxu0 0.0
        %809 = vmatprep.subr.mxu0 0.0
        %810 = vmatpush1.msra.mxu0 0.0
        %811 = vmatprep.subr.mxu0 0.0
        %812 = vmatpush1.msra.mxu0 0.0
        %813 = vmatprep.subr.mxu0 0.0
        %814 = vmatpush1.msra.mxu0 0.0
        %815 = vmatprep.subr.mxu0 0.0
        %816 = vmatpush1.msra.mxu0 0.0
        %817 = vmatprep.subr.mxu0 0.0
        %818 = vmatpush1.msra.mxu0 0.0
        %819 = vmatprep.subr.mxu0 0.0
        %820 = vmatpush1.msra.mxu0 0.0
        %821 = vmatprep.subr.mxu0 0.0
        %822 = vmatpush1.msra.mxu0 0.0
        %823 = vmatprep.subr.mxu0 0.0
        %824 = vmatpush1.msra.mxu0 0.0
        %825 = vmatprep.subr.mxu0 0.0
        %826 = vmatpush1.msra.mxu0 0.0
        %827 = vmatprep.mubr.f32.mxu0 0.0
        %828 = vmatmul.mubr.f32.gmra.mrb[0].mxu0 %v749
        %v829 = vpop.f32.mrb[0].mxu0
        %v830 = vadd.f32 0.0, %v829
        %v831 = vpop.f32.mrb[0].mxu0
        %v832 = vadd.f32 0.0, %v831
        %833 = vmatprep.mubr.f32.mxu0 0.0
        %834 = vmatmul.mubr.f32.gmra.mrb[0].mxu0 %v751
        %v835 = vpop.f32.mrb[0].mxu0
        %v836 = vadd.f32 0.0, %v835
        %v837 = vpop.f32.mrb[0].mxu0
        %v838 = vadd.f32 0.0, %v837
        %839 = vmatprep.mubr.f32.mxu0 0.0
        %840 = vmatmul.mubr.f32.gmra.mrb[0].mxu0 %v753
        %v841 = vpop.f32.mrb[0].mxu0
        %v842 = vadd.f32 0.0, %v841
        %v843 = vpop.f32.mrb[0].mxu0
        %v844 = vadd.f32 0.0, %v843
        %845 = vmatprep.mubr.f32.mxu0 0.0
        %846 = vmatmul.mubr.f32.gmra.mrb[0].mxu0 %v755
        %v847 = vpop.f32.mrb[0].mxu0
        %v848 = vadd.f32 0.0, %v847
        %v849 = vpop.f32.mrb[0].mxu0
        %v850 = vadd.f32 0.0, %v849
        %851 = vdwg.mxu0
        %v852 = vadd.f32 %v711, %v830
        %v853 = vadd.f32 %v713, %v832
        %v854 = vadd.f32 %v717, %v836
        %v855 = vadd.f32 %v719, %v838
        %v856 = vadd.f32 %v723, %v842
        %v857 = vadd.f32 %v725, %v844
        %v858 = vadd.f32 %v729, %v848
        %v859 = vadd.f32 %v731, %v850
        %v860 = vld [vmem:[%s2] sm:$0x3]
        %v862 = vlaneseq
        %v863 = vshrl.u32 %v862, 7
        %v864 = vsub.s32 0, %v863
        %v865 = vrot.slane %v860, %v864
        %v866 = vlaneseq
        %v867 = vshrl.u32 %v866, 7
        %v868 = vsub.s32 1, %v867
        %v869 = vrot.slane %v860, %v868
        %v872 = vadd.f32 %v852, %v865
        %v873 = vadd.f32 %v853, %v869
        %v874 = vadd.f32 %v854, %v865
        %v875 = vadd.f32 %v855, %v869
        %v876 = vadd.f32 %v856, %v865
        %v877 = vadd.f32 %v857, %v869
        %v878 = vadd.f32 %v858, %v865
        %v879 = vadd.f32 %v859, %v869
        %v880 = vmax.f32 %v872, 0.0
        %v881 = vmax.f32 %v873, 0.0
        %v882 = vmax.f32 %v874, 0.0
        %v883 = vmax.f32 %v875, 0.0
        %v884 = vmax.f32 %v876, 0.0
        %v885 = vmax.f32 %v877, 0.0
        %v886 = vmax.f32 %v878, 0.0
        %v887 = vmax.f32 %v879, 0.0
        %v888 = vld [vmem:[%s3] sm:$0xff]
        %v889 = vld [vmem:[%s3 + $0x8] sm:$0x3f]
        %vm890 = vcmask 228352
        %v892 = vsel %vm890, %v888, 0
        %v895 = vsel %vm890, %v889, 0
        %vm897 = vcmask 1043456
        %v899 = vsel %vm897, %v886, 0
        %v902 = vsel %vm897, %v887, 0
        %904 = vmatprep.subr.mxu0 %v881
        %905 = vmatpush1.msra.mxu0 %v880
        %906 = vmatprep.subr.mxu0 %v883
        %907 = vmatpush1.msra.mxu0 %v882
        %908 = vmatprep.subr.mxu0 %v885
        %909 = vmatpush1.msra.mxu0 %v884
        %910 = vmatprep.subr.mxu0 %v902
        %911 = vmatpush1.msra.mxu0 %v899
        %912 = vmatprep.subr.mxu0 0.0
        %913 = vmatpush1.msra.mxu0 0.0
        %914 = vmatprep.subr.mxu0 0.0
        %915 = vmatpush1.msra.mxu0 0.0
        %916 = vmatprep.subr.mxu0 0.0
        %917 = vmatpush1.msra.mxu0 0.0
        %918 = vmatprep.subr.mxu0 0.0
        %919 = vmatpush1.msra.mxu0 0.0
        %920 = vmatprep.subr.mxu0 0.0
        %921 = vmatpush1.msra.mxu0 0.0
        %922 = vmatprep.subr.mxu0 0.0
        %923 = vmatpush1.msra.mxu0 0.0
        %924 = vmatprep.subr.mxu0 0.0
        %925 = vmatpush1.msra.mxu0 0.0
        %926 = vmatprep.subr.mxu0 0.0
        %927 = vmatpush1.msra.mxu0 0.0
        %928 = vmatprep.subr.mxu0 0.0
        %929 = vmatpush1.msra.mxu0 0.0
        %930 = vmatprep.subr.mxu0 0.0
        %931 = vmatpush1.msra.mxu0 0.0
        %932 = vmatprep.subr.mxu0 0.0
        %933 = vmatpush1.msra.mxu0 0.0
        %934 = vmatprep.subr.mxu0 0.0
        %935 = vmatpush1.msra.mxu0 0.0
        %936 = vmatprep.subr.mxu0 0.0
        %937 = vmatpush1.msra.mxu0 0.0
        %938 = vmatprep.subr.mxu0 0.0
        %939 = vmatpush1.msra.mxu0 0.0
        %940 = vmatprep.subr.mxu0 0.0
        %941 = vmatpush1.msra.mxu0 0.0
        %942 = vmatprep.subr.mxu0 0.0
        %943 = vmatpush1.msra.mxu0 0.0
        %944 = vmatprep.subr.mxu0 0.0
        %945 = vmatpush1.msra.mxu0 0.0
        %946 = vmatprep.subr.mxu0 0.0
        %947 = vmatpush1.msra.mxu0 0.0
        %948 = vmatprep.subr.mxu0 0.0
        %949 = vmatpush1.msra.mxu0 0.0
        %950 = vmatprep.subr.mxu0 0.0
        %951 = vmatpush1.msra.mxu0 0.0
        %952 = vmatprep.subr.mxu0 0.0
        %953 = vmatpush1.msra.mxu0 0.0
        %954 = vmatprep.subr.mxu0 0.0
        %955 = vmatpush1.msra.mxu0 0.0
        %956 = vmatprep.subr.mxu0 0.0
        %957 = vmatpush1.msra.mxu0 0.0
        %958 = vmatprep.subr.mxu0 0.0
        %959 = vmatpush1.msra.mxu0 0.0
        %960 = vmatprep.subr.mxu0 0.0
        %961 = vmatpush1.msra.mxu0 0.0
        %962 = vmatprep.subr.mxu0 0.0
        %963 = vmatpush1.msra.mxu0 0.0
        %964 = vmatprep.subr.mxu0 0.0
        %965 = vmatpush1.msra.mxu0 0.0
        %966 = vmatprep.subr.mxu0 0.0
        %967 = vmatpush1.msra.mxu0 0.0
        %968 = vmatprep.mubr.f32.mxu0 0.0
        %969 = vmatmul.mubr.f32.gmra.mrb[0].mxu0 %v892
        %v970 = vpop.f32.mrb[0].mxu0
        %v971 = vadd.f32 0.0, %v970
        %v972 = vpop.f32.mrb[0].mxu0
        %v973 = vadd.f32 0.0, %v972
        %974 = vmatprep.mubr.f32.mxu0 0.0
        %975 = vmatmul.mubr.f32.gmra.mrb[0].mxu0 %v895
        %v976 = vpop.f32.mrb[0].mxu0
        %v977 = vadd.f32 0.0, %v976
        %v978 = vpop.f32.mrb[0].mxu0
        %v979 = vadd.f32 0.0, %v978
        %980 = vdwg.mxu0
        %v981 = vld [vmem:[%s4] sm:$0xff]
        %v982 = vld [vmem:[%s4 + $0x8] sm:$0xff]
        %v983 = vld [vmem:[%s4 + $0x10] sm:$0xff]
        %v984 = vld [vmem:[%s4 + $0x18] sm:$0xff]
        %v985 = vld [vmem:[%s4 + $0x20] sm:$0xff]
        %v986 = vld [vmem:[%s4 + $0x28] sm:$0xff]
        %v987 = vld [vmem:[%s4 + $0x30] sm:$0xff]
        %v988 = vld [vmem:[%s4 + $0x38] sm:$0xff]
        %v989 = vld [vmem:[%s4 + $0x40] sm:$0xff]
        %v990 = vld [vmem:[%s4 + $0x48] sm:$0xff]
        %v991 = vld [vmem:[%s4 + $0x50] sm:$0xff]
        %v992 = vld [vmem:[%s4 + $0x58] sm:$0xff]
        %v993 = vld [vmem:[%s4 + $0x60] sm:$0xff]
        %v994 = vld [vmem:[%s4 + $0x68] sm:$0xff]
        %v995 = vld [vmem:[%s4 + $0x70] sm:$0xff]
        %v996 = vld [vmem:[%s4 + $0x78] sm:$0xff]
        %v997 = vld [vmem:[%s4 + $0x80] sm:$0xff]
        %v998 = vld [vmem:[%s4 + $0x88] sm:$0xff]
        %v999 = vld [vmem:[%s4 + $0x90] sm:$0xff]
        %v1000 = vld [vmem:[%s4 + $0x98] sm:$0xff]
        %v1001 = vld [vmem:[%s4 + $0xa0] sm:$0xff]
        %vm1002 = vcmask 326656
        %v1004 = vsel %vm1002, %v973, 0
        %v1007 = vsel %vm1002, %v979, 0
        %1009 = vmatprep.subr.mxu0 0.0
        %1010 = vmatpush1.msra.mxu0 %v981
        %1011 = vmatprep.subr.mxu0 0.0
        %1012 = vmatpush1.msra.mxu0 %v982
        %1013 = vmatprep.subr.mxu0 0.0
        %1014 = vmatpush1.msra.mxu0 %v983
        %1015 = vmatprep.subr.mxu0 0.0
        %1016 = vmatpush1.msra.mxu0 %v984
        %1017 = vmatprep.subr.mxu0 0.0
        %1018 = vmatpush1.msra.mxu0 %v985
        %1019 = vmatprep.subr.mxu0 0.0
        %1020 = vmatpush1.msra.mxu0 %v986
        %1021 = vmatprep.subr.mxu0 0.0
        %1022 = vmatpush1.msra.mxu0 %v987
        %1023 = vmatprep.subr.mxu0 0.0
        %1024 = vmatpush1.msra.mxu0 %v988
        %1025 = vmatprep.subr.mxu0 0.0
        %1026 = vmatpush1.msra.mxu0 %v989
        %1027 = vmatprep.subr.mxu0 0.0
        %1028 = vmatpush1.msra.mxu0 %v990
        %1029 = vmatprep.subr.mxu0 0.0
        %1030 = vmatpush1.msra.mxu0 %v991
        %1031 = vmatprep.subr.mxu0 0.0
        %1032 = vmatpush1.msra.mxu0 %v992
        %1033 = vmatprep.subr.mxu0 0.0
        %1034 = vmatpush1.msra.mxu0 %v993
        %1035 = vmatprep.subr.mxu0 0.0
        %1036 = vmatpush1.msra.mxu0 %v994
        %1037 = vmatprep.subr.mxu0 0.0
        %1038 = vmatpush1.msra.mxu0 %v995
        %1039 = vmatprep.subr.mxu0 0.0
        %1040 = vmatpush1.msra.mxu0 %v996
        %1041 = vmatprep.subr.mxu0 0.0
        %1042 = vmatpush1.msra.mxu0 %v997
        %1043 = vmatprep.subr.mxu0 0.0
        %1044 = vmatpush1.msra.mxu0 %v998
        %1045 = vmatprep.subr.mxu0 0.0
        %1046 = vmatpush1.msra.mxu0 %v999
        %1047 = vmatprep.subr.mxu0 0.0
        %1048 = vmatpush1.msra.mxu0 %v1000
        %1049 = vmatprep.subr.mxu0 0.0
        %1050 = vmatpush1.msra.mxu0 %v1001
        %1051 = vmatprep.subr.mxu0 0.0
        %1052 = vmatpush1.msra.mxu0 0.0
        %1053 = vmatprep.subr.mxu0 0.0
        %1054 = vmatpush1.msra.mxu0 0.0
        %1055 = vmatprep.subr.mxu0 0.0
        %1056 = vmatpush1.msra.mxu0 0.0
        %1057 = vmatprep.subr.mxu0 0.0
        %1058 = vmatpush1.msra.mxu0 0.0
        %1059 = vmatprep.subr.mxu0 0.0
        %1060 = vmatpush1.msra.mxu0 0.0
        %1061 = vmatprep.subr.mxu0 0.0
        %1062 = vmatpush1.msra.mxu0 0.0
        %1063 = vmatprep.subr.mxu0 0.0
        %1064 = vmatpush1.msra.mxu0 0.0
        %1065 = vmatprep.subr.mxu0 0.0
        %1066 = vmatpush1.msra.mxu0 0.0
        %1067 = vmatprep.subr.mxu0 0.0
        %1068 = vmatpush1.msra.mxu0 0.0
        %1069 = vmatprep.subr.mxu0 0.0
        %1070 = vmatpush1.msra.mxu0 0.0
        %1071 = vmatprep.subr.mxu0 0.0
        %1072 = vmatpush1.msra.mxu0 0.0
        %1073 = vmatprep.mubr.f32.mxu0 %v1004
        %1074 = vmatmul.mubr.f32.gmra.mrb[0].mxu0 %v971
        %v1075 = vpop.f32.mrb[0].mxu0
        %v1076 = vadd.f32 0.0, %v1075
        %v1077 = vpop.f32.mrb[0].mxu0
        %1078 = vmatprep.mubr.f32.mxu0 %v1007
        %1079 = vmatmul.mubr.f32.gmra.mrb[0].mxu0 %v977
        %v1080 = vpop.f32.mrb[0].mxu0
        %v1081 = vadd.f32 0.0, %v1080
        %v1082 = vpop.f32.mrb[0].mxu0
        %1083 = vdwg.mxu0
        %v1084 = vld [vmem:[%s5] sm:$0xff]
        %v1085 = vld [vmem:[%s5 + $0x8] sm:$0xff]
        %v1086 = vld [vmem:[%s5 + $0x10] sm:$0xff]
        %v1087 = vld [vmem:[%s5 + $0x18] sm:$0xff]
        %v1088 = vld [vmem:[%s5 + $0x20] sm:$0xff]
        %v1089 = vld [vmem:[%s5 + $0x28] sm:$0xff]
        %v1090 = vld [vmem:[%s5 + $0x30] sm:$0xff]
        %v1091 = vld [vmem:[%s5 + $0x38] sm:$0xff]
        %v1092 = vld [vmem:[%s5 + $0x40] sm:$0xff]
        %v1093 = vld [vmem:[%s5 + $0x48] sm:$0xff]
        %v1094 = vld [vmem:[%s5 + $0x50] sm:$0xff]
        %v1095 = vld [vmem:[%s5 + $0x58] sm:$0xff]
        %v1096 = vld [vmem:[%s5 + $0x60] sm:$0xff]
        %v1097 = vld [vmem:[%s5 + $0x68] sm:$0xff]
        %v1098 = vld [vmem:[%s5 + $0x70] sm:$0xff]
        %v1099 = vld [vmem:[%s5 + $0x78] sm:$0xff]
        %v1100 = vld [vmem:[%s5 + $0x80] sm:$0xff]
        %v1101 = vld [vmem:[%s5 + $0x88] sm:$0xff]
        %v1102 = vld [vmem:[%s5 + $0x90] sm:$0xff]
        %v1103 = vld [vmem:[%s5 + $0x98] sm:$0xff]
        %v1104 = vld [vmem:[%s5 + $0xa0] sm:$0xf]
        %v1105 = vld [vmem:[%s5 + $0xa8] sm:$0xf]
        %s1106 = scalar_lea.vmem %s5, 176
        %v1107 = vld [vmem:[%s1106] sm:$0xff]
        %v1108 = vld [vmem:[%s1106 + $0x8] sm:$0xff]
        %v1109 = vld [vmem:[%s1106 + $0x10] sm:$0xff]
        %v1110 = vld [vmem:[%s1106 + $0x18] sm:$0xff]
        %v1111 = vld [vmem:[%s1106 + $0x20] sm:$0xff]
        %v1112 = vld [vmem:[%s1106 + $0x28] sm:$0xff]
        %v1113 = vld [vmem:[%s1106 + $0x30] sm:$0xff]
        %v1114 = vld [vmem:[%s1106 + $0x38] sm:$0xff]
        %v1115 = vld [vmem:[%s1106 + $0x40] sm:$0xff]
        %v1116 = vld [vmem:[%s1106 + $0x48] sm:$0xff]
        %v1117 = vld [vmem:[%s1106 + $0x50] sm:$0xff]
        %v1118 = vld [vmem:[%s1106 + $0x58] sm:$0xff]
        %v1119 = vld [vmem:[%s1106 + $0x60] sm:$0xff]
        %v1120 = vld [vmem:[%s1106 + $0x68] sm:$0xff]
        %v1121 = vld [vmem:[%s1106 + $0x70] sm:$0xff]
        %v1122 = vld [vmem:[%s1106 + $0x78] sm:$0xff]
        %v1123 = vld [vmem:[%s1106 + $0x80] sm:$0xff]
        %v1124 = vld [vmem:[%s1106 + $0x88] sm:$0xff]
        %v1125 = vld [vmem:[%s1106 + $0x90] sm:$0xff]
        %v1126 = vld [vmem:[%s1106 + $0x98] sm:$0xff]
        %v1127 = vld [vmem:[%s1106 + $0xa0] sm:$0xf]
        %v1128 = vld [vmem:[%s1106 + $0xa8] sm:$0xf]
        %v1131 = vrot.slane %v1076, 1
        %v1132 = vrot.slane %v1081, 1
        %v1133 = vsel %vm517, %v1131, %v1132
        %vm1134 = vcmask 687104
        %v1135 = vsel %vm1134, %v1133, 0
        %v1137 = vsel %vm1134, %v1132, 0
        %v1140 = vsel %vm897, %v1127, 0
        %v1143 = vsel %vm897, %v1128, 0
        %1145 = vmatprep.subr.mxu0 %v1108
        %1146 = vmatpush1.msra.mxu0 %v1107
        %1147 = vmatprep.subr.mxu0 %v1110
        %1148 = vmatpush1.msra.mxu0 %v1109
        %1149 = vmatprep.subr.mxu0 %v1112
        %1150 = vmatpush1.msra.mxu0 %v1111
        %1151 = vmatprep.subr.mxu0 %v1114
        %1152 = vmatpush1.msra.mxu0 %v1113
        %1153 = vmatprep.subr.mxu0 %v1116
        %1154 = vmatpush1.msra.mxu0 %v1115
        %1155 = vmatprep.subr.mxu0 %v1118
        %1156 = vmatpush1.msra.mxu0 %v1117
        %1157 = vmatprep.subr.mxu0 %v1120
        %1158 = vmatpush1.msra.mxu0 %v1119
        %1159 = vmatprep.subr.mxu0 %v1122
        %1160 = vmatpush1.msra.mxu0 %v1121
        %1161 = vmatprep.subr.mxu0 %v1124
        %1162 = vmatpush1.msra.mxu0 %v1123
        %1163 = vmatprep.subr.mxu0 %v1126
        %1164 = vmatpush1.msra.mxu0 %v1125
        %1165 = vmatprep.subr.mxu0 %v1143
        %1166 = vmatpush1.msra.mxu0 %v1140
        %1167 = vmatprep.subr.mxu0 0.0
        %1168 = vmatpush1.msra.mxu0 0.0
        %1169 = vmatprep.subr.mxu0 0.0
        %1170 = vmatpush1.msra.mxu0 0.0
        %1171 = vmatprep.subr.mxu0 0.0
        %1172 = vmatpush1.msra.mxu0 0.0
        %1173 = vmatprep.subr.mxu0 0.0
        %1174 = vmatpush1.msra.mxu0 0.0
        %1175 = vmatprep.subr.mxu0 0.0
        %1176 = vmatpush1.msra.mxu0 0.0
        %1177 = vmatprep.subr.mxu0 0.0
        %1178 = vmatpush1.msra.mxu0 0.0
        %1179 = vmatprep.subr.mxu0 0.0
        %1180 = vmatpush1.msra.mxu0 0.0
        %1181 = vmatprep.subr.mxu0 0.0
        %1182 = vmatpush1.msra.mxu0 0.0
        %1183 = vmatprep.subr.mxu0 0.0
        %1184 = vmatpush1.msra.mxu0 0.0
        %1185 = vmatprep.subr.mxu0 0.0
        %1186 = vmatpush1.msra.mxu0 0.0
        %1187 = vmatprep.subr.mxu0 0.0
        %1188 = vmatpush1.msra.mxu0 0.0
        %1189 = vmatprep.subr.mxu0 0.0
        %1190 = vmatpush1.msra.mxu0 0.0
        %1191 = vmatprep.subr.mxu0 0.0
        %1192 = vmatpush1.msra.mxu0 0.0
        %1193 = vmatprep.subr.mxu0 0.0
        %1194 = vmatpush1.msra.mxu0 0.0
        %1195 = vmatprep.subr.mxu0 0.0
        %1196 = vmatpush1.msra.mxu0 0.0
        %1197 = vmatprep.subr.mxu0 0.0
        %1198 = vmatpush1.msra.mxu0 0.0
        %1199 = vmatprep.subr.mxu0 0.0
        %1200 = vmatpush1.msra.mxu0 0.0
        %1201 = vmatprep.subr.mxu0 0.0
        %1202 = vmatpush1.msra.mxu0 0.0
        %1203 = vmatprep.subr.mxu0 0.0
        %1204 = vmatpush1.msra.mxu0 0.0
        %1205 = vmatprep.subr.mxu0 0.0
        %1206 = vmatpush1.msra.mxu0 0.0
        %1207 = vmatprep.subr.mxu0 0.0
        %1208 = vmatpush1.msra.mxu0 0.0
        %1209 = vmatprep.mubr.f32.mxu0 0.0
        %1210 = vmatmul.mubr.f32.gmra.mrb[0].mxu0 %v1135
        %v1211 = vpop.f32.mrb[0].mxu0
        %v1212 = vadd.f32 0.0, %v1211
        %v1213 = vpop.f32.mrb[0].mxu0
        %v1214 = vadd.f32 0.0, %v1213
        %1215 = vmatprep.mubr.f32.mxu0 0.0
        %1216 = vmatmul.mubr.f32.gmra.mrb[0].mxu0 %v1137
        %v1217 = vpop.f32.mrb[0].mxu0
        %v1218 = vadd.f32 0.0, %v1217
        %v1219 = vpop.f32.mrb[0].mxu0
        %v1220 = vadd.f32 0.0, %v1219
        %1221 = vdwg.mxu0
        %v1222 = vsel %vm1134, %v1076, 0
        %v1224 = vsel %vm1134, %v1081, 0
        %v1227 = vsel %vm897, %v1104, 0
        %v1230 = vsel %vm897, %v1105, 0
        %1232 = vmatprep.subr.mxu0 %v1085
        %1233 = vmatpush1.msra.mxu0 %v1084
        %1234 = vmatprep.subr.mxu0 %v1087
        %1235 = vmatpush1.msra.mxu0 %v1086
        %1236 = vmatprep.subr.mxu0 %v1089
        %1237 = vmatpush1.msra.mxu0 %v1088
        %1238 = vmatprep.subr.mxu0 %v1091
        %1239 = vmatpush1.msra.mxu0 %v1090
        %1240 = vmatprep.subr.mxu0 %v1093
        %1241 = vmatpush1.msra.mxu0 %v1092
        %1242 = vmatprep.subr.mxu0 %v1095
        %1243 = vmatpush1.msra.mxu0 %v1094
        %1244 = vmatprep.subr.mxu0 %v1097
        %1245 = vmatpush1.msra.mxu0 %v1096
        %1246 = vmatprep.subr.mxu0 %v1099
        %1247 = vmatpush1.msra.mxu0 %v1098
        %1248 = vmatprep.subr.mxu0 %v1101
        %1249 = vmatpush1.msra.mxu0 %v1100
        %1250 = vmatprep.subr.mxu0 %v1103
        %1251 = vmatpush1.msra.mxu0 %v1102
        %1252 = vmatprep.subr.mxu0 %v1230
        %1253 = vmatpush1.msra.mxu0 %v1227
        %1254 = vmatprep.subr.mxu0 0.0
        %1255 = vmatpush1.msra.mxu0 0.0
        %1256 = vmatprep.subr.mxu0 0.0
        %1257 = vmatpush1.msra.mxu0 0.0
        %1258 = vmatprep.subr.mxu0 0.0
        %1259 = vmatpush1.msra.mxu0 0.0
        %1260 = vmatprep.subr.mxu0 0.0
        %1261 = vmatpush1.msra.mxu0 0.0
        %1262 = vmatprep.subr.mxu0 0.0
        %1263 = vmatpush1.msra.mxu0 0.0
        %1264 = vmatprep.subr.mxu0 0.0
        %1265 = vmatpush1.msra.mxu0 0.0
        %1266 = vmatprep.subr.mxu0 0.0
        %1267 = vmatpush1.msra.mxu0 0.0
        %1268 = vmatprep.subr.mxu0 0.0
        %1269 = vmatpush1.msra.mxu0 0.0
        %1270 = vmatprep.subr.mxu0 0.0
        %1271 = vmatpush1.msra.mxu0 0.0
        %1272 = vmatprep.subr.mxu0 0.0
        %1273 = vmatpush1.msra.mxu0 0.0
        %1274 = vmatprep.subr.mxu0 0.0
        %1275 = vmatpush1.msra.mxu0 0.0
        %1276 = vmatprep.subr.mxu0 0.0
        %1277 = vmatpush1.msra.mxu0 0.0
        %1278 = vmatprep.subr.mxu0 0.0
        %1279 = vmatpush1.msra.mxu0 0.0
        %1280 = vmatprep.subr.mxu0 0.0
        %1281 = vmatpush1.msra.mxu0 0.0
        %1282 = vmatprep.subr.mxu0 0.0
        %1283 = vmatpush1.msra.mxu0 0.0
        %1284 = vmatprep.subr.mxu0 0.0
        %1285 = vmatpush1.msra.mxu0 0.0
        %1286 = vmatprep.subr.mxu0 0.0
        %1287 = vmatpush1.msra.mxu0 0.0
        %1288 = vmatprep.subr.mxu0 0.0
        %1289 = vmatpush1.msra.mxu0 0.0
        %1290 = vmatprep.subr.mxu0 0.0
        %1291 = vmatpush1.msra.mxu0 0.0
        %1292 = vmatprep.subr.mxu0 0.0
        %1293 = vmatpush1.msra.mxu0 0.0
        %1294 = vmatprep.subr.mxu0 0.0
        %1295 = vmatpush1.msra.mxu0 0.0
        %1296 = vmatprep.mubr.f32.mxu0 0.0
        %1297 = vmatmul.mubr.f32.gmra.mrb[0].mxu0 %v1222
        %v1298 = vpop.f32.mrb[0].mxu0
        %v1299 = vadd.f32 %v1212, %v1298
        %v1300 = vpop.f32.mrb[0].mxu0
        %v1301 = vadd.f32 %v1214, %v1300
        %1302 = vmatprep.mubr.f32.mxu0 0.0
        %1303 = vmatmul.mubr.f32.gmra.mrb[0].mxu0 %v1224
        %v1304 = vpop.f32.mrb[0].mxu0
        %v1305 = vadd.f32 %v1218, %v1304
        %v1306 = vpop.f32.mrb[0].mxu0
        %v1307 = vadd.f32 %v1220, %v1306
        %1308 = vdwg.mxu0
        %s1309 = scalar_lea.vmem %s5, 352
        %v1310 = vld [vmem:[%s1309] sm:$0xff]
        %v1311 = vld [vmem:[%s1309 + $0x8] sm:$0xff]
        %v1312 = vld [vmem:[%s1309 + $0x10] sm:$0xff]
        %v1313 = vld [vmem:[%s1309 + $0x18] sm:$0xff]
        %v1314 = vld [vmem:[%s1309 + $0x20] sm:$0xff]
        %v1315 = vld [vmem:[%s1309 + $0x28] sm:$0xff]
        %v1316 = vld [vmem:[%s1309 + $0x30] sm:$0xff]
        %v1317 = vld [vmem:[%s1309 + $0x38] sm:$0xff]
        %v1318 = vld [vmem:[%s1309 + $0x40] sm:$0xff]
        %v1319 = vld [vmem:[%s1309 + $0x48] sm:$0xff]
        %v1320 = vld [vmem:[%s1309 + $0x50] sm:$0xff]
        %v1321 = vld [vmem:[%s1309 + $0x58] sm:$0xff]
        %v1322 = vld [vmem:[%s1309 + $0x60] sm:$0xff]
        %v1323 = vld [vmem:[%s1309 + $0x68] sm:$0xff]
        %v1324 = vld [vmem:[%s1309 + $0x70] sm:$0xff]
        %v1325 = vld [vmem:[%s1309 + $0x78] sm:$0xff]
        %v1326 = vld [vmem:[%s1309 + $0x80] sm:$0xff]
        %v1327 = vld [vmem:[%s1309 + $0x88] sm:$0xff]
        %v1328 = vld [vmem:[%s1309 + $0x90] sm:$0xff]
        %v1329 = vld [vmem:[%s1309 + $0x98] sm:$0xff]
        %v1330 = vld [vmem:[%s1309 + $0xa0] sm:$0xf]
        %v1331 = vld [vmem:[%s1309 + $0xa8] sm:$0xf]
        %v1332 = vrot.slane %v1076, 2
        %v1333 = vrot.slane %v1081, 2
        %v1334 = vsel %vm534, %v1332, %v1333
        %v1335 = vsel %vm1134, %v1334, 0
        %v1337 = vsel %vm1134, %v1333, 0
        %v1340 = vsel %vm897, %v1330, 0
        %v1343 = vsel %vm897, %v1331, 0
        %1345 = vmatprep.subr.mxu0 %v1311
        %1346 = vmatpush1.msra.mxu0 %v1310
        %1347 = vmatprep.subr.mxu0 %v1313
        %1348 = vmatpush1.msra.mxu0 %v1312
        %1349 = vmatprep.subr.mxu0 %v1315
        %1350 = vmatpush1.msra.mxu0 %v1314
        %1351 = vmatprep.subr.mxu0 %v1317
        %1352 = vmatpush1.msra.mxu0 %v1316
        %1353 = vmatprep.subr.mxu0 %v1319
        %1354 = vmatpush1.msra.mxu0 %v1318
        %1355 = vmatprep.subr.mxu0 %v1321
        %1356 = vmatpush1.msra.mxu0 %v1320
        %1357 = vmatprep.subr.mxu0 %v1323
        %1358 = vmatpush1.msra.mxu0 %v1322
        %1359 = vmatprep.subr.mxu0 %v1325
        %1360 = vmatpush1.msra.mxu0 %v1324
        %1361 = vmatprep.subr.mxu0 %v1327
        %1362 = vmatpush1.msra.mxu0 %v1326
        %1363 = vmatprep.subr.mxu0 %v1329
        %1364 = vmatpush1.msra.mxu0 %v1328
        %1365 = vmatprep.subr.mxu0 %v1343
        %1366 = vmatpush1.msra.mxu0 %v1340
        %1367 = vmatprep.subr.mxu0 0.0
        %1368 = vmatpush1.msra.mxu0 0.0
        %1369 = vmatprep.subr.mxu0 0.0
        %1370 = vmatpush1.msra.mxu0 0.0
        %1371 = vmatprep.subr.mxu0 0.0
        %1372 = vmatpush1.msra.mxu0 0.0
        %1373 = vmatprep.subr.mxu0 0.0
        %1374 = vmatpush1.msra.mxu0 0.0
        %1375 = vmatprep.subr.mxu0 0.0
        %1376 = vmatpush1.msra.mxu0 0.0
        %1377 = vmatprep.subr.mxu0 0.0
        %1378 = vmatpush1.msra.mxu0 0.0
        %1379 = vmatprep.subr.mxu0 0.0
        %1380 = vmatpush1.msra.mxu0 0.0
        %1381 = vmatprep.subr.mxu0 0.0
        %1382 = vmatpush1.msra.mxu0 0.0
        %1383 = vmatprep.subr.mxu0 0.0
        %1384 = vmatpush1.msra.mxu0 0.0
        %1385 = vmatprep.subr.mxu0 0.0
        %1386 = vmatpush1.msra.mxu0 0.0
        %1387 = vmatprep.subr.mxu0 0.0
        %1388 = vmatpush1.msra.mxu0 0.0
        %1389 = vmatprep.subr.mxu0 0.0
        %1390 = vmatpush1.msra.mxu0 0.0
        %1391 = vmatprep.subr.mxu0 0.0
        %1392 = vmatpush1.msra.mxu0 0.0
        %1393 = vmatprep.subr.mxu0 0.0
        %1394 = vmatpush1.msra.mxu0 0.0
        %1395 = vmatprep.subr.mxu0 0.0
        %1396 = vmatpush1.msra.mxu0 0.0
        %1397 = vmatprep.subr.mxu0 0.0
        %1398 = vmatpush1.msra.mxu0 0.0
        %1399 = vmatprep.subr.mxu0 0.0
        %1400 = vmatpush1.msra.mxu0 0.0
        %1401 = vmatprep.subr.mxu0 0.0
        %1402 = vmatpush1.msra.mxu0 0.0
        %1403 = vmatprep.subr.mxu0 0.0
        %1404 = vmatpush1.msra.mxu0 0.0
        %1405 = vmatprep.subr.mxu0 0.0
        %1406 = vmatpush1.msra.mxu0 0.0
        %1407 = vmatprep.subr.mxu0 0.0
        %1408 = vmatpush1.msra.mxu0 0.0
        %1409 = vmatprep.mubr.f32.mxu0 0.0
        %1410 = vmatmul.mubr.f32.gmra.mrb[0].mxu0 %v1335
        %v1411 = vpop.f32.mrb[0].mxu0
        %v1412 = vadd.f32 0.0, %v1411
        %v1413 = vpop.f32.mrb[0].mxu0
        %v1414 = vadd.f32 0.0, %v1413
        %1415 = vmatprep.mubr.f32.mxu0 0.0
        %1416 = vmatmul.mubr.f32.gmra.mrb[0].mxu0 %v1337
        %v1417 = vpop.f32.mrb[0].mxu0
        %v1418 = vadd.f32 0.0, %v1417
        %v1419 = vpop.f32.mrb[0].mxu0
        %v1420 = vadd.f32 0.0, %v1419
        %1421 = vdwg.mxu0
        %v1422 = vadd.f32 %v1299, %v1412
        %v1423 = vadd.f32 %v1301, %v1414
        %v1424 = vadd.f32 %v1305, %v1418
        %v1425 = vadd.f32 %v1307, %v1420
        %s1426 = scalar_lea.vmem %s5, 528
        %v1427 = vld [vmem:[%s1426] sm:$0xff]
        %v1428 = vld [vmem:[%s1426 + $0x8] sm:$0xff]
        %v1429 = vld [vmem:[%s1426 + $0x10] sm:$0xff]
        %v1430 = vld [vmem:[%s1426 + $0x18] sm:$0xff]
        %v1431 = vld [vmem:[%s1426 + $0x20] sm:$0xff]
        %v1432 = vld [vmem:[%s1426 + $0x28] sm:$0xff]
        %v1433 = vld [vmem:[%s1426 + $0x30] sm:$0xff]
        %v1434 = vld [vmem:[%s1426 + $0x38] sm:$0xff]
        %v1435 = vld [vmem:[%s1426 + $0x40] sm:$0xff]
        %v1436 = vld [vmem:[%s1426 + $0x48] sm:$0xff]
        %v1437 = vld [vmem:[%s1426 + $0x50] sm:$0xff]
        %v1438 = vld [vmem:[%s1426 + $0x58] sm:$0xff]
        %v1439 = vld [vmem:[%s1426 + $0x60] sm:$0xff]
        %v1440 = vld [vmem:[%s1426 + $0x68] sm:$0xff]
        %v1441 = vld [vmem:[%s1426 + $0x70] sm:$0xff]
        %v1442 = vld [vmem:[%s1426 + $0x78] sm:$0xff]
        %v1443 = vld [vmem:[%s1426 + $0x80] sm:$0xff]
        %v1444 = vld [vmem:[%s1426 + $0x88] sm:$0xff]
        %v1445 = vld [vmem:[%s1426 + $0x90] sm:$0xff]
        %v1446 = vld [vmem:[%s1426 + $0x98] sm:$0xff]
        %v1447 = vld [vmem:[%s1426 + $0xa0] sm:$0xf]
        %v1448 = vld [vmem:[%s1426 + $0xa8] sm:$0xf]
        %vm1449 = vcmask 1044480
        %v1450 = vrot.slane %v1076, 3
        %v1451 = vrot.slane %v1081, 3
        %v1452 = vsel %vm1449, %v1450, %v1451
        %v1453 = vsel %vm1134, %v1452, 0
        %v1455 = vsel %vm1134, %v1451, 0
        %v1458 = vsel %vm897, %v1447, 0
        %v1461 = vsel %vm897, %v1448, 0
        %1463 = vmatprep.subr.mxu0 %v1428
        %1464 = vmatpush1.msra.mxu0 %v1427
        %1465 = vmatprep.subr.mxu0 %v1430
        %1466 = vmatpush1.msra.mxu0 %v1429
        %1467 = vmatprep.subr.mxu0 %v1432
        %1468 = vmatpush1.msra.mxu0 %v1431
        %1469 = vmatprep.subr.mxu0 %v1434
        %1470 = vmatpush1.msra.mxu0 %v1433
        %1471 = vmatprep.subr.mxu0 %v1436
        %1472 = vmatpush1.msra.mxu0 %v1435
        %1473 = vmatprep.subr.mxu0 %v1438
        %1474 = vmatpush1.msra.mxu0 %v1437
        %1475 = vmatprep.subr.mxu0 %v1440
        %1476 = vmatpush1.msra.mxu0 %v1439
        %1477 = vmatprep.subr.mxu0 %v1442
        %1478 = vmatpush1.msra.mxu0 %v1441
        %1479 = vmatprep.subr.mxu0 %v1444
        %1480 = vmatpush1.msra.mxu0 %v1443
        %1481 = vmatprep.subr.mxu0 %v1446
        %1482 = vmatpush1.msra.mxu0 %v1445
        %1483 = vmatprep.subr.mxu0 %v1461
        %1484 = vmatpush1.msra.mxu0 %v1458
        %1485 = vmatprep.subr.mxu0 0.0
        %1486 = vmatpush1.msra.mxu0 0.0
        %1487 = vmatprep.subr.mxu0 0.0
        %1488 = vmatpush1.msra.mxu0 0.0
        %1489 = vmatprep.subr.mxu0 0.0
        %1490 = vmatpush1.msra.mxu0 0.0
        %1491 = vmatprep.subr.mxu0 0.0
        %1492 = vmatpush1.msra.mxu0 0.0
        %1493 = vmatprep.subr.mxu0 0.0
        %1494 = vmatpush1.msra.mxu0 0.0
        %1495 = vmatprep.subr.mxu0 0.0
        %1496 = vmatpush1.msra.mxu0 0.0
        %1497 = vmatprep.subr.mxu0 0.0
        %1498 = vmatpush1.msra.mxu0 0.0
        %1499 = vmatprep.subr.mxu0 0.0
        %1500 = vmatpush1.msra.mxu0 0.0
        %1501 = vmatprep.subr.mxu0 0.0
        %1502 = vmatpush1.msra.mxu0 0.0
        %1503 = vmatprep.subr.mxu0 0.0
        %1504 = vmatpush1.msra.mxu0 0.0
        %1505 = vmatprep.subr.mxu0 0.0
        %1506 = vmatpush1.msra.mxu0 0.0
        %1507 = vmatprep.subr.mxu0 0.0
        %1508 = vmatpush1.msra.mxu0 0.0
        %1509 = vmatprep.subr.mxu0 0.0
        %1510 = vmatpush1.msra.mxu0 0.0
        %1511 = vmatprep.subr.mxu0 0.0
        %1512 = vmatpush1.msra.mxu0 0.0
        %1513 = vmatprep.subr.mxu0 0.0
        %1514 = vmatpush1.msra.mxu0 0.0
        %1515 = vmatprep.subr.mxu0 0.0
        %1516 = vmatpush1.msra.mxu0 0.0
        %1517 = vmatprep.subr.mxu0 0.0
        %1518 = vmatpush1.msra.mxu0 0.0
        %1519 = vmatprep.subr.mxu0 0.0
        %1520 = vmatpush1.msra.mxu0 0.0
        %1521 = vmatprep.subr.mxu0 0.0
        %1522 = vmatpush1.msra.mxu0 0.0
        %1523 = vmatprep.subr.mxu0 0.0
        %1524 = vmatpush1.msra.mxu0 0.0
        %1525 = vmatprep.subr.mxu0 0.0
        %1526 = vmatpush1.msra.mxu0 0.0
        %1527 = vmatprep.mubr.f32.mxu0 0.0
        %1528 = vmatmul.mubr.f32.gmra.mrb[0].mxu0 %v1453
        %v1529 = vpop.f32.mrb[0].mxu0
        %v1530 = vadd.f32 0.0, %v1529
        %v1531 = vpop.f32.mrb[0].mxu0
        %v1532 = vadd.f32 0.0, %v1531
        %1533 = vmatprep.mubr.f32.mxu0 0.0
        %1534 = vmatmul.mubr.f32.gmra.mrb[0].mxu0 %v1455
        %v1535 = vpop.f32.mrb[0].mxu0
        %v1536 = vadd.f32 0.0, %v1535
        %v1537 = vpop.f32.mrb[0].mxu0
        %v1538 = vadd.f32 0.0, %v1537
        %1539 = vdwg.mxu0
        %v1540 = vadd.f32 %v1422, %v1530
        %v1541 = vadd.f32 %v1423, %v1532
        %v1542 = vadd.f32 %v1424, %v1536
        %v1543 = vadd.f32 %v1425, %v1538
        %s1544 = scalar_lea.vmem %s5, 704
        %v1545 = vld [vmem:[%s1544] sm:$0xff]
        %v1546 = vld [vmem:[%s1544 + $0x8] sm:$0xff]
        %v1547 = vld [vmem:[%s1544 + $0x10] sm:$0xff]
        %v1548 = vld [vmem:[%s1544 + $0x18] sm:$0xff]
        %v1549 = vld [vmem:[%s1544 + $0x20] sm:$0xff]
        %v1550 = vld [vmem:[%s1544 + $0x28] sm:$0xff]
        %v1551 = vld [vmem:[%s1544 + $0x30] sm:$0xff]
        %v1552 = vld [vmem:[%s1544 + $0x38] sm:$0xff]
        %v1553 = vld [vmem:[%s1544 + $0x40] sm:$0xff]
        %v1554 = vld [vmem:[%s1544 + $0x48] sm:$0xff]
        %v1555 = vld [vmem:[%s1544 + $0x50] sm:$0xff]
        %v1556 = vld [vmem:[%s1544 + $0x58] sm:$0xff]
        %v1557 = vld [vmem:[%s1544 + $0x60] sm:$0xff]
        %v1558 = vld [vmem:[%s1544 + $0x68] sm:$0xff]
        %v1559 = vld [vmem:[%s1544 + $0x70] sm:$0xff]
        %v1560 = vld [vmem:[%s1544 + $0x78] sm:$0xff]
        %v1561 = vld [vmem:[%s1544 + $0x80] sm:$0xff]
        %v1562 = vld [vmem:[%s1544 + $0x88] sm:$0xff]
        %v1563 = vld [vmem:[%s1544 + $0x90] sm:$0xff]
        %v1564 = vld [vmem:[%s1544 + $0x98] sm:$0xff]
        %v1565 = vld [vmem:[%s1544 + $0xa0] sm:$0xf]
        %v1566 = vld [vmem:[%s1544 + $0xa8] sm:$0xf]
        %v1567 = vrot.slane %v1076, 4
        %v1568 = vrot.slane %v1081, 4
        %v1569 = vsel %vm897, %v1567, %v1568
        %v1570 = vsel %vm1134, %v1569, 0
        %v1572 = vsel %vm1134, %v1568, 0
        %v1575 = vsel %vm897, %v1565, 0
        %v1578 = vsel %vm897, %v1566, 0
        %1580 = vmatprep.subr.mxu0 %v1546
        %1581 = vmatpush1.msra.mxu0 %v1545
        %1582 = vmatprep.subr.mxu0 %v1548
        %1583 = vmatpush1.msra.mxu0 %v1547
        %1584 = vmatprep.subr.mxu0 %v1550
        %1585 = vmatpush1.msra.mxu0 %v1549
        %1586 = vmatprep.subr.mxu0 %v1552
        %1587 = vmatpush1.msra.mxu0 %v1551
        %1588 = vmatprep.subr.mxu0 %v1554
        %1589 = vmatpush1.msra.mxu0 %v1553
        %1590 = vmatprep.subr.mxu0 %v1556
        %1591 = vmatpush1.msra.mxu0 %v1555
        %1592 = vmatprep.subr.mxu0 %v1558
        %1593 = vmatpush1.msra.mxu0 %v1557
        %1594 = vmatprep.subr.mxu0 %v1560
        %1595 = vmatpush1.msra.mxu0 %v1559
        %1596 = vmatprep.subr.mxu0 %v1562
        %1597 = vmatpush1.msra.mxu0 %v1561
        %1598 = vmatprep.subr.mxu0 %v1564
        %1599 = vmatpush1.msra.mxu0 %v1563
        %1600 = vmatprep.subr.mxu0 %v1578
        %1601 = vmatpush1.msra.mxu0 %v1575
        %1602 = vmatprep.subr.mxu0 0.0
        %1603 = vmatpush1.msra.mxu0 0.0
        %1604 = vmatprep.subr.mxu0 0.0
        %1605 = vmatpush1.msra.mxu0 0.0
        %1606 = vmatprep.subr.mxu0 0.0
        %1607 = vmatpush1.msra.mxu0 0.0
        %1608 = vmatprep.subr.mxu0 0.0
        %1609 = vmatpush1.msra.mxu0 0.0
        %1610 = vmatprep.subr.mxu0 0.0
        %1611 = vmatpush1.msra.mxu0 0.0
        %1612 = vmatprep.subr.mxu0 0.0
        %1613 = vmatpush1.msra.mxu0 0.0
        %1614 = vmatprep.subr.mxu0 0.0
        %1615 = vmatpush1.msra.mxu0 0.0
        %1616 = vmatprep.subr.mxu0 0.0
        %1617 = vmatpush1.msra.mxu0 0.0
        %1618 = vmatprep.subr.mxu0 0.0
        %1619 = vmatpush1.msra.mxu0 0.0
        %1620 = vmatprep.subr.mxu0 0.0
        %1621 = vmatpush1.msra.mxu0 0.0
        %1622 = vmatprep.subr.mxu0 0.0
        %1623 = vmatpush1.msra.mxu0 0.0
        %1624 = vmatprep.subr.mxu0 0.0
        %1625 = vmatpush1.msra.mxu0 0.0
        %1626 = vmatprep.subr.mxu0 0.0
        %1627 = vmatpush1.msra.mxu0 0.0
        %1628 = vmatprep.subr.mxu0 0.0
        %1629 = vmatpush1.msra.mxu0 0.0
        %1630 = vmatprep.subr.mxu0 0.0
        %1631 = vmatpush1.msra.mxu0 0.0
        %1632 = vmatprep.subr.mxu0 0.0
        %1633 = vmatpush1.msra.mxu0 0.0
        %1634 = vmatprep.subr.mxu0 0.0
        %1635 = vmatpush1.msra.mxu0 0.0
        %1636 = vmatprep.subr.mxu0 0.0
        %1637 = vmatpush1.msra.mxu0 0.0
        %1638 = vmatprep.subr.mxu0 0.0
        %1639 = vmatpush1.msra.mxu0 0.0
        %1640 = vmatprep.subr.mxu0 0.0
        %1641 = vmatpush1.msra.mxu0 0.0
        %1642 = vmatprep.subr.mxu0 0.0
        %1643 = vmatpush1.msra.mxu0 0.0
        %1644 = vmatprep.mubr.f32.mxu0 0.0
        %1645 = vmatmul.mubr.f32.gmra.mrb[0].mxu0 %v1570
        %v1646 = vpop.f32.mrb[0].mxu0
        %v1647 = vadd.f32 0.0, %v1646
        %v1648 = vpop.f32.mrb[0].mxu0
        %v1649 = vadd.f32 0.0, %v1648
        %1650 = vmatprep.mubr.f32.mxu0 0.0
        %1651 = vmatmul.mubr.f32.gmra.mrb[0].mxu0 %v1572
        %v1652 = vpop.f32.mrb[0].mxu0
        %v1653 = vadd.f32 0.0, %v1652
        %v1654 = vpop.f32.mrb[0].mxu0
        %v1655 = vadd.f32 0.0, %v1654
        %1656 = vdwg.mxu0
        %v1657 = vadd.f32 %v1540, %v1647
        %v1658 = vadd.f32 %v1541, %v1649
        %v1659 = vadd.f32 %v1542, %v1653
        %v1660 = vadd.f32 %v1543, %v1655
        %v1661 = vld [vmem:[%s6] sm:$0x3]
        %v1663 = vlaneseq
        %v1664 = vshrl.u32 %v1663, 7
        %v1665 = vsub.s32 0, %v1664
        %v1666 = vrot.slane %v1661, %v1665
        %v1667 = vlaneseq
        %v1668 = vshrl.u32 %v1667, 7
        %v1669 = vsub.s32 1, %v1668
        %v1670 = vrot.slane %v1661, %v1669
        %v1673 = vadd.f32 %v1657, %v1666
        %v1674 = vadd.f32 %v1658, %v1670
        %v1675 = vadd.f32 %v1659, %v1666
        %v1676 = vadd.f32 %v1660, %v1670
        %v1677 = vmax.f32 %v1673, 0.0
        %v1678 = vmax.f32 %v1674, 0.0
        %v1679 = vmax.f32 %v1675, 0.0
        %v1680 = vmax.f32 %v1676, 0.0
        %v1681 = vld [vmem:[%s7] sm:$0x1f]
        %vm1682 = vcmask 80896
        %v1684 = vsel %vm1682, %v1681, 0
        %vm1686 = vcmask 1041408
        %v1688 = vsel %vm1686, %v1679, 0
        %v1691 = vsel %vm1686, %v1680, 0
        %1693 = vmatprep.subr.mxu0 %v1678
        %1694 = vmatpush1.msra.mxu0 %v1677
        %1695 = vmatprep.subr.mxu0 %v1691
        %1696 = vmatpush1.msra.mxu0 %v1688
        %1697 = vmatprep.subr.mxu0 0.0
        %1698 = vmatpush1.msra.mxu0 0.0
        %1699 = vmatprep.subr.mxu0 0.0
        %1700 = vmatpush1.msra.mxu0 0.0
        %1701 = vmatprep.subr.mxu0 0.0
        %1702 = vmatpush1.msra.mxu0 0.0
        %1703 = vmatprep.subr.mxu0 0.0
        %1704 = vmatpush1.msra.mxu0 0.0
        %1705 = vmatprep.subr.mxu0 0.0
        %1706 = vmatpush1.msra.mxu0 0.0
        %1707 = vmatprep.subr.mxu0 0.0
        %1708 = vmatpush1.msra.mxu0 0.0
        %1709 = vmatprep.subr.mxu0 0.0
        %1710 = vmatpush1.msra.mxu0 0.0
        %1711 = vmatprep.subr.mxu0 0.0
        %1712 = vmatpush1.msra.mxu0 0.0
        %1713 = vmatprep.subr.mxu0 0.0
        %1714 = vmatpush1.msra.mxu0 0.0
        %1715 = vmatprep.subr.mxu0 0.0
        %1716 = vmatpush1.msra.mxu0 0.0
        %1717 = vmatprep.subr.mxu0 0.0
        %1718 = vmatpush1.msra.mxu0 0.0
        %1719 = vmatprep.subr.mxu0 0.0
        %1720 = vmatpush1.msra.mxu0 0.0
        %1721 = vmatprep.subr.mxu0 0.0
        %1722 = vmatpush1.msra.mxu0 0.0
        %1723 = vmatprep.subr.mxu0 0.0
        %1724 = vmatpush1.msra.mxu0 0.0
        %1725 = vmatprep.subr.mxu0 0.0
        %1726 = vmatpush1.msra.mxu0 0.0
        %1727 = vmatprep.subr.mxu0 0.0
        %1728 = vmatpush1.msra.mxu0 0.0
        %1729 = vmatprep.subr.mxu0 0.0
        %1730 = vmatpush1.msra.mxu0 0.0
        %1731 = vmatprep.subr.mxu0 0.0
        %1732 = vmatpush1.msra.mxu0 0.0
        %1733 = vmatprep.subr.mxu0 0.0
        %1734 = vmatpush1.msra.mxu0 0.0
        %1735 = vmatprep.subr.mxu0 0.0
        %1736 = vmatpush1.msra.mxu0 0.0
        %1737 = vmatprep.subr.mxu0 0.0
        %1738 = vmatpush1.msra.mxu0 0.0
        %1739 = vmatprep.subr.mxu0 0.0
        %1740 = vmatpush1.msra.mxu0 0.0
        %1741 = vmatprep.subr.mxu0 0.0
        %1742 = vmatpush1.msra.mxu0 0.0
        %1743 = vmatprep.subr.mxu0 0.0
        %1744 = vmatpush1.msra.mxu0 0.0
        %1745 = vmatprep.subr.mxu0 0.0
        %1746 = vmatpush1.msra.mxu0 0.0
        %1747 = vmatprep.subr.mxu0 0.0
        %1748 = vmatpush1.msra.mxu0 0.0
        %1749 = vmatprep.subr.mxu0 0.0
        %1750 = vmatpush1.msra.mxu0 0.0
        %1751 = vmatprep.subr.mxu0 0.0
        %1752 = vmatpush1.msra.mxu0 0.0
        %1753 = vmatprep.subr.mxu0 0.0
        %1754 = vmatpush1.msra.mxu0 0.0
        %1755 = vmatprep.subr.mxu0 0.0
        %1756 = vmatpush1.msra.mxu0 0.0
        %1757 = vmatprep.mubr.f32.mxu0 0.0
        %1758 = vmatmul.mubr.f32.gmra.mrb[0].mxu0 %v1684
        %v1759 = vpop.f32.mrb[0].mxu0
        %v1760 = vadd.f32 0.0, %v1759
        %v1761 = vpop.f32.mrb[0].mxu0
        %v1762 = vadd.f32 0.0, %v1761
        %1763 = vdwg.mxu0
        %v1764 = vld [vmem:[%s8] sm:$0xff]
        %v1765 = vld [vmem:[%s8 + $0x8] sm:$0xff]
        %v1766 = vld [vmem:[%s8 + $0x10] sm:$0xff]
        %v1767 = vld [vmem:[%s8 + $0x18] sm:$0xff]
        %v1768 = vld [vmem:[%s8 + $0x20] sm:$0xff]
        %v1769 = vld [vmem:[%s8 + $0x28] sm:$0xff]
        %v1770 = vld [vmem:[%s8 + $0x30] sm:$0xff]
        %v1771 = vld [vmem:[%s8 + $0x38] sm:$0xff]
        %v1772 = vld [vmem:[%s8 + $0x40] sm:$0xff]
        %v1773 = vld [vmem:[%s8 + $0x48] sm:$0xff]
        %v1774 = vld [vmem:[%s8 + $0x50] sm:$0xff]
        %v1775 = vld [vmem:[%s8 + $0x58] sm:$0xff]
        %v1776 = vld [vmem:[%s8 + $0x60] sm:$0xff]
        %v1777 = vld [vmem:[%s8 + $0x68] sm:$0xff]
        %v1778 = vld [vmem:[%s8 + $0x70] sm:$0xff]
        %v1779 = vld [vmem:[%s8 + $0x78] sm:$0xff]
        %v1780 = vld [vmem:[%s8 + $0x80] sm:$0xff]
        %v1781 = vld [vmem:[%s8 + $0x88] sm:$0xff]
        %v1782 = vld [vmem:[%s8 + $0x90] sm:$0xff]
        %v1783 = vld [vmem:[%s8 + $0x98] sm:$0xff]
        %vm1784 = vcmask 261120
        %v1786 = vsel %vm1784, %v1762, 0
        %1788 = vmatprep.subr.mxu0 0.0
        %1789 = vmatpush1.msra.mxu0 %v1764
        %1790 = vmatprep.subr.mxu0 0.0
        %1791 = vmatpush1.msra.mxu0 %v1765
        %1792 = vmatprep.subr.mxu0 0.0
        %1793 = vmatpush1.msra.mxu0 %v1766
        %1794 = vmatprep.subr.mxu0 0.0
        %1795 = vmatpush1.msra.mxu0 %v1767
        %1796 = vmatprep.subr.mxu0 0.0
        %1797 = vmatpush1.msra.mxu0 %v1768
        %1798 = vmatprep.subr.mxu0 0.0
        %1799 = vmatpush1.msra.mxu0 %v1769
        %1800 = vmatprep.subr.mxu0 0.0
        %1801 = vmatpush1.msra.mxu0 %v1770
        %1802 = vmatprep.subr.mxu0 0.0
        %1803 = vmatpush1.msra.mxu0 %v1771
        %1804 = vmatprep.subr.mxu0 0.0
        %1805 = vmatpush1.msra.mxu0 %v1772
        %1806 = vmatprep.subr.mxu0 0.0
        %1807 = vmatpush1.msra.mxu0 %v1773
        %1808 = vmatprep.subr.mxu0 0.0
        %1809 = vmatpush1.msra.mxu0 %v1774
        %1810 = vmatprep.subr.mxu0 0.0
        %1811 = vmatpush1.msra.mxu0 %v1775
        %1812 = vmatprep.subr.mxu0 0.0
        %1813 = vmatpush1.msra.mxu0 %v1776
        %1814 = vmatprep.subr.mxu0 0.0
        %1815 = vmatpush1.msra.mxu0 %v1777
        %1816 = vmatprep.subr.mxu0 0.0
        %1817 = vmatpush1.msra.mxu0 %v1778
        %1818 = vmatprep.subr.mxu0 0.0
        %1819 = vmatpush1.msra.mxu0 %v1779
        %1820 = vmatprep.subr.mxu0 0.0
        %1821 = vmatpush1.msra.mxu0 %v1780
        %1822 = vmatprep.subr.mxu0 0.0
        %1823 = vmatpush1.msra.mxu0 %v1781
        %1824 = vmatprep.subr.mxu0 0.0
        %1825 = vmatpush1.msra.mxu0 %v1782
        %1826 = vmatprep.subr.mxu0 0.0
        %1827 = vmatpush1.msra.mxu0 %v1783
        %1828 = vmatprep.subr.mxu0 0.0
        %1829 = vmatpush1.msra.mxu0 0.0
        %1830 = vmatprep.subr.mxu0 0.0
        %1831 = vmatpush1.msra.mxu0 0.0
        %1832 = vmatprep.subr.mxu0 0.0
        %1833 = vmatpush1.msra.mxu0 0.0
        %1834 = vmatprep.subr.mxu0 0.0
        %1835 = vmatpush1.msra.mxu0 0.0
        %1836 = vmatprep.subr.mxu0 0.0
        %1837 = vmatpush1.msra.mxu0 0.0
        %1838 = vmatprep.subr.mxu0 0.0
        %1839 = vmatpush1.msra.mxu0 0.0
        %1840 = vmatprep.subr.mxu0 0.0
        %1841 = vmatpush1.msra.mxu0 0.0
        %1842 = vmatprep.subr.mxu0 0.0
        %1843 = vmatpush1.msra.mxu0 0.0
        %1844 = vmatprep.subr.mxu0 0.0
        %1845 = vmatpush1.msra.mxu0 0.0
        %1846 = vmatprep.subr.mxu0 0.0
        %1847 = vmatpush1.msra.mxu0 0.0
        %1848 = vmatprep.subr.mxu0 0.0
        %1849 = vmatpush1.msra.mxu0 0.0
        %1850 = vmatprep.subr.mxu0 0.0
        %1851 = vmatpush1.msra.mxu0 0.0
        %1852 = vmatprep.mubr.f32.mxu0 %v1786
        %1853 = vmatmul.mubr.f32.gmra.mrb[0].mxu0 %v1760
        %v1854 = vpop.f32.mrb[0].mxu0
        %v1855 = vadd.f32 0.0, %v1854
        %v1856 = vpop.f32.mrb[0].mxu0
        %1857 = vdwg.mxu0
        %v1858 = vld [vmem:[%s9] sm:$0xff]
        %v1859 = vld [vmem:[%s9 + $0x8] sm:$0xff]
        %v1860 = vld [vmem:[%s9 + $0x10] sm:$0xff]
        %v1861 = vld [vmem:[%s9 + $0x18] sm:$0xff]
        %v1862 = vld [vmem:[%s9 + $0x20] sm:$0xff]
        %v1863 = vld [vmem:[%s9 + $0x28] sm:$0xff]
        %v1864 = vld [vmem:[%s9 + $0x30] sm:$0xff]
        %v1865 = vld [vmem:[%s9 + $0x38] sm:$0xff]
        %v1866 = vld [vmem:[%s9 + $0x40] sm:$0xff]
        %v1867 = vld [vmem:[%s9 + $0x48] sm:$0xff]
        %s1868 = scalar_lea.vmem %s9, 80
        %v1869 = vld [vmem:[%s1868] sm:$0xff]
        %v1870 = vld [vmem:[%s1868 + $0x8] sm:$0xff]
        %v1871 = vld [vmem:[%s1868 + $0x10] sm:$0xff]
        %v1872 = vld [vmem:[%s1868 + $0x18] sm:$0xff]
        %v1873 = vld [vmem:[%s1868 + $0x20] sm:$0xff]
        %v1874 = vld [vmem:[%s1868 + $0x28] sm:$0xff]
        %v1875 = vld [vmem:[%s1868 + $0x30] sm:$0xff]
        %v1876 = vld [vmem:[%s1868 + $0x38] sm:$0xff]
        %v1877 = vld [vmem:[%s1868 + $0x40] sm:$0xff]
        %v1878 = vld [vmem:[%s1868 + $0x48] sm:$0xff]
        %v1880 = vrot.slane %v1855, 1
        %vm1881 = vcmask 654336
        %v1882 = vsel %vm1881, %v1880, 0
        %1884 = vmatprep.subr.mxu0 0.0
        %1885 = vmatpush1.msra.mxu0 %v1869
        %1886 = vmatprep.subr.mxu0 0.0
        %1887 = vmatpush1.msra.mxu0 %v1870
        %1888 = vmatprep.subr.mxu0 0.0
        %1889 = vmatpush1.msra.mxu0 %v1871
        %1890 = vmatprep.subr.mxu0 0.0
        %1891 = vmatpush1.msra.mxu0 %v1872
        %1892 = vmatprep.subr.mxu0 0.0
        %1893 = vmatpush1.msra.mxu0 %v1873
        %1894 = vmatprep.subr.mxu0 0.0
        %1895 = vmatpush1.msra.mxu0 %v1874
        %1896 = vmatprep.subr.mxu0 0.0
        %1897 = vmatpush1.msra.mxu0 %v1875
        %1898 = vmatprep.subr.mxu0 0.0
        %1899 = vmatpush1.msra.mxu0 %v1876
        %1900 = vmatprep.subr.mxu0 0.0
        %1901 = vmatpush1.msra.mxu0 %v1877
        %1902 = vmatprep.subr.mxu0 0.0
        %1903 = vmatpush1.msra.mxu0 %v1878
        %1904 = vmatprep.subr.mxu0 0.0
        %1905 = vmatpush1.msra.mxu0 0.0
        %1906 = vmatprep.subr.mxu0 0.0
        %1907 = vmatpush1.msra.mxu0 0.0
        %1908 = vmatprep.subr.mxu0 0.0
        %1909 = vmatpush1.msra.mxu0 0.0
        %1910 = vmatprep.subr.mxu0 0.0
        %1911 = vmatpush1.msra.mxu0 0.0
        %1912 = vmatprep.subr.mxu0 0.0
        %1913 = vmatpush1.msra.mxu0 0.0
        %1914 = vmatprep.subr.mxu0 0.0
        %1915 = vmatpush1.msra.mxu0 0.0
        %1916 = vmatprep.subr.mxu0 0.0
        %1917 = vmatpush1.msra.mxu0 0.0
        %1918 = vmatprep.subr.mxu0 0.0
        %1919 = vmatpush1.msra.mxu0 0.0
        %1920 = vmatprep.subr.mxu0 0.0
        %1921 = vmatpush1.msra.mxu0 0.0
        %1922 = vmatprep.subr.mxu0 0.0
        %1923 = vmatpush1.msra.mxu0 0.0
        %1924 = vmatprep.subr.mxu0 0.0
        %1925 = vmatpush1.msra.mxu0 0.0
        %1926 = vmatprep.subr.mxu0 0.0
        %1927 = vmatpush1.msra.mxu0 0.0
        %1928 = vmatprep.subr.mxu0 0.0
        %1929 = vmatpush1.msra.mxu0 0.0
        %1930 = vmatprep.subr.mxu0 0.0
        %1931 = vmatpush1.msra.mxu0 0.0
        %1932 = vmatprep.subr.mxu0 0.0
        %1933 = vmatpush1.msra.mxu0 0.0
        %1934 = vmatprep.subr.mxu0 0.0
        %1935 = vmatpush1.msra.mxu0 0.0
        %1936 = vmatprep.subr.mxu0 0.0
        %1937 = vmatpush1.msra.mxu0 0.0
        %1938 = vmatprep.subr.mxu0 0.0
        %1939 = vmatpush1.msra.mxu0 0.0
        %1940 = vmatprep.subr.mxu0 0.0
        %1941 = vmatpush1.msra.mxu0 0.0
        %1942 = vmatprep.subr.mxu0 0.0
        %1943 = vmatpush1.msra.mxu0 0.0
        %1944 = vmatprep.subr.mxu0 0.0
        %1945 = vmatpush1.msra.mxu0 0.0
        %1946 = vmatprep.subr.mxu0 0.0
        %1947 = vmatpush1.msra.mxu0 0.0
        %1948 = vmatprep.mubr.f32.mxu0 0.0
        %1949 = vmatmul.mubr.f32.gmra.mrb[0].mxu0 %v1882
        %v1950 = vpop.f32.mrb[0].mxu0
        %v1951 = vadd.f32 0.0, %v1950
        %v1952 = vpop.f32.mrb[0].mxu0
        %1953 = vdwg.mxu0
        %v1954 = vsel %vm1881, %v1855, 0
        %1956 = vmatprep.subr.mxu0 0.0
        %1957 = vmatpush1.msra.mxu0 %v1858
        %1958 = vmatprep.subr.mxu0 0.0
        %1959 = vmatpush1.msra.mxu0 %v1859
        %1960 = vmatprep.subr.mxu0 0.0
        %1961 = vmatpush1.msra.mxu0 %v1860
        %1962 = vmatprep.subr.mxu0 0.0
        %1963 = vmatpush1.msra.mxu0 %v1861
        %1964 = vmatprep.subr.mxu0 0.0
        %1965 = vmatpush1.msra.mxu0 %v1862
        %1966 = vmatprep.subr.mxu0 0.0
        %1967 = vmatpush1.msra.mxu0 %v1863
        %1968 = vmatprep.subr.mxu0 0.0
        %1969 = vmatpush1.msra.mxu0 %v1864
        %1970 = vmatprep.subr.mxu0 0.0
        %1971 = vmatpush1.msra.mxu0 %v1865
        %1972 = vmatprep.subr.mxu0 0.0
        %1973 = vmatpush1.msra.mxu0 %v1866
        %1974 = vmatprep.subr.mxu0 0.0
        %1975 = vmatpush1.msra.mxu0 %v1867
        %1976 = vmatprep.subr.mxu0 0.0
        %1977 = vmatpush1.msra.mxu0 0.0
        %1978 = vmatprep.subr.mxu0 0.0
        %1979 = vmatpush1.msra.mxu0 0.0
        %1980 = vmatprep.subr.mxu0 0.0
        %1981 = vmatpush1.msra.mxu0 0.0
        %1982 = vmatprep.subr.mxu0 0.0
        %1983 = vmatpush1.msra.mxu0 0.0
        %1984 = vmatprep.subr.mxu0 0.0
        %1985 = vmatpush1.msra.mxu0 0.0
        %1986 = vmatprep.subr.mxu0 0.0
        %1987 = vmatpush1.msra.mxu0 0.0
        %1988 = vmatprep.subr.mxu0 0.0
        %1989 = vmatpush1.msra.mxu0 0.0
        %1990 = vmatprep.subr.mxu0 0.0
        %1991 = vmatpush1.msra.mxu0 0.0
        %1992 = vmatprep.subr.mxu0 0.0
        %1993 = vmatpush1.msra.mxu0 0.0
        %1994 = vmatprep.subr.mxu0 0.0
        %1995 = vmatpush1.msra.mxu0 0.0
        %1996 = vmatprep.subr.mxu0 0.0
        %1997 = vmatpush1.msra.mxu0 0.0
        %1998 = vmatprep.subr.mxu0 0.0
        %1999 = vmatpush1.msra.mxu0 0.0
        %2000 = vmatprep.subr.mxu0 0.0
        %2001 = vmatpush1.msra.mxu0 0.0
        %2002 = vmatprep.subr.mxu0 0.0
        %2003 = vmatpush1.msra.mxu0 0.0
        %2004 = vmatprep.subr.mxu0 0.0
        %2005 = vmatpush1.msra.mxu0 0.0
        %2006 = vmatprep.subr.mxu0 0.0
        %2007 = vmatpush1.msra.mxu0 0.0
        %2008 = vmatprep.subr.mxu0 0.0
        %2009 = vmatpush1.msra.mxu0 0.0
        %2010 = vmatprep.subr.mxu0 0.0
        %2011 = vmatpush1.msra.mxu0 0.0
        %2012 = vmatprep.subr.mxu0 0.0
        %2013 = vmatpush1.msra.mxu0 0.0
        %2014 = vmatprep.subr.mxu0 0.0
        %2015 = vmatpush1.msra.mxu0 0.0
        %2016 = vmatprep.subr.mxu0 0.0
        %2017 = vmatpush1.msra.mxu0 0.0
        %2018 = vmatprep.subr.mxu0 0.0
        %2019 = vmatpush1.msra.mxu0 0.0
        %2020 = vmatprep.mubr.f32.mxu0 0.0
        %2021 = vmatmul.mubr.f32.gmra.mrb[0].mxu0 %v1954
        %v2022 = vpop.f32.mrb[0].mxu0
        %v2023 = vadd.f32 %v1951, %v2022
        %v2024 = vpop.f32.mrb[0].mxu0
        %2025 = vdwg.mxu0
        %s2026 = scalar_lea.vmem %s9, 160
        %v2027 = vld [vmem:[%s2026] sm:$0xff]
        %v2028 = vld [vmem:[%s2026 + $0x8] sm:$0xff]
        %v2029 = vld [vmem:[%s2026 + $0x10] sm:$0xff]
        %v2030 = vld [vmem:[%s2026 + $0x18] sm:$0xff]
        %v2031 = vld [vmem:[%s2026 + $0x20] sm:$0xff]
        %v2032 = vld [vmem:[%s2026 + $0x28] sm:$0xff]
        %v2033 = vld [vmem:[%s2026 + $0x30] sm:$0xff]
        %v2034 = vld [vmem:[%s2026 + $0x38] sm:$0xff]
        %v2035 = vld [vmem:[%s2026 + $0x40] sm:$0xff]
        %v2036 = vld [vmem:[%s2026 + $0x48] sm:$0xff]
        %v2037 = vrot.slane %v1855, 2
        %v2038 = vsel %vm1881, %v2037, 0
        %2040 = vmatprep.subr.mxu0 0.0
        %2041 = vmatpush1.msra.mxu0 %v2027
        %2042 = vmatprep.subr.mxu0 0.0
        %2043 = vmatpush1.msra.mxu0 %v2028
        %2044 = vmatprep.subr.mxu0 0.0
        %2045 = vmatpush1.msra.mxu0 %v2029
        %2046 = vmatprep.subr.mxu0 0.0
        %2047 = vmatpush1.msra.mxu0 %v2030
        %2048 = vmatprep.subr.mxu0 0.0
        %2049 = vmatpush1.msra.mxu0 %v2031
        %2050 = vmatprep.subr.mxu0 0.0
        %2051 = vmatpush1.msra.mxu0 %v2032
        %2052 = vmatprep.subr.mxu0 0.0
        %2053 = vmatpush1.msra.mxu0 %v2033
        %2054 = vmatprep.subr.mxu0 0.0
        %2055 = vmatpush1.msra.mxu0 %v2034
        %2056 = vmatprep.subr.mxu0 0.0
        %2057 = vmatpush1.msra.mxu0 %v2035
        %2058 = vmatprep.subr.mxu0 0.0
        %2059 = vmatpush1.msra.mxu0 %v2036
        %2060 = vmatprep.subr.mxu0 0.0
        %2061 = vmatpush1.msra.mxu0 0.0
        %2062 = vmatprep.subr.mxu0 0.0
        %2063 = vmatpush1.msra.mxu0 0.0
        %2064 = vmatprep.subr.mxu0 0.0
        %2065 = vmatpush1.msra.mxu0 0.0
        %2066 = vmatprep.subr.mxu0 0.0
        %2067 = vmatpush1.msra.mxu0 0.0
        %2068 = vmatprep.subr.mxu0 0.0
        %2069 = vmatpush1.msra.mxu0 0.0
        %2070 = vmatprep.subr.mxu0 0.0
        %2071 = vmatpush1.msra.mxu0 0.0
        %2072 = vmatprep.subr.mxu0 0.0
        %2073 = vmatpush1.msra.mxu0 0.0
        %2074 = vmatprep.subr.mxu0 0.0
        %2075 = vmatpush1.msra.mxu0 0.0
        %2076 = vmatprep.subr.mxu0 0.0
        %2077 = vmatpush1.msra.mxu0 0.0
        %2078 = vmatprep.subr.mxu0 0.0
        %2079 = vmatpush1.msra.mxu0 0.0
        %2080 = vmatprep.subr.mxu0 0.0
        %2081 = vmatpush1.msra.mxu0 0.0
        %2082 = vmatprep.subr.mxu0 0.0
        %2083 = vmatpush1.msra.mxu0 0.0
        %2084 = vmatprep.subr.mxu0 0.0
        %2085 = vmatpush1.msra.mxu0 0.0
        %2086 = vmatprep.subr.mxu0 0.0
        %2087 = vmatpush1.msra.mxu0 0.0
        %2088 = vmatprep.subr.mxu0 0.0
        %2089 = vmatpush1.msra.mxu0 0.0
        %2090 = vmatprep.subr.mxu0 0.0
        %2091 = vmatpush1.msra.mxu0 0.0
        %2092 = vmatprep.subr.mxu0 0.0
        %2093 = vmatpush1.msra.mxu0 0.0
        %2094 = vmatprep.subr.mxu0 0.0
        %2095 = vmatpush1.msra.mxu0 0.0
        %2096 = vmatprep.subr.mxu0 0.0
        %2097 = vmatpush1.msra.mxu0 0.0
        %2098 = vmatprep.subr.mxu0 0.0
        %2099 = vmatpush1.msra.mxu0 0.0
        %2100 = vmatprep.subr.mxu0 0.0
        %2101 = vmatpush1.msra.mxu0 0.0
        %2102 = vmatprep.subr.mxu0 0.0
        %2103 = vmatpush1.msra.mxu0 0.0
        %2104 = vmatprep.mubr.f32.mxu0 0.0
        %2105 = vmatmul.mubr.f32.gmra.mrb[0].mxu0 %v2038
        %v2106 = vpop.f32.mrb[0].mxu0
        %v2107 = vadd.f32 0.0, %v2106
        %v2108 = vpop.f32.mrb[0].mxu0
        %2109 = vdwg.mxu0
        %v2110 = vadd.f32 %v2023, %v2107
        %s2111 = scalar_lea.vmem %s9, 240
        %v2112 = vld [vmem:[%s2111] sm:$0xff]
        %v2113 = vld [vmem:[%s2111 + $0x8] sm:$0xff]
        %v2114 = vld [vmem:[%s2111 + $0x10] sm:$0xff]
        %v2115 = vld [vmem:[%s2111 + $0x18] sm:$0xff]
        %v2116 = vld [vmem:[%s2111 + $0x20] sm:$0xff]
        %v2117 = vld [vmem:[%s2111 + $0x28] sm:$0xff]
        %v2118 = vld [vmem:[%s2111 + $0x30] sm:$0xff]
        %v2119 = vld [vmem:[%s2111 + $0x38] sm:$0xff]
        %v2120 = vld [vmem:[%s2111 + $0x40] sm:$0xff]
        %v2121 = vld [vmem:[%s2111 + $0x48] sm:$0xff]
        %v2122 = vrot.slane %v1855, 3
        %v2123 = vsel %vm1881, %v2122, 0
        %2125 = vmatprep.subr.mxu0 0.0
        %2126 = vmatpush1.msra.mxu0 %v2112
        %2127 = vmatprep.subr.mxu0 0.0
        %2128 = vmatpush1.msra.mxu0 %v2113
        %2129 = vmatprep.subr.mxu0 0.0
        %2130 = vmatpush1.msra.mxu0 %v2114
        %2131 = vmatprep.subr.mxu0 0.0
        %2132 = vmatpush1.msra.mxu0 %v2115
        %2133 = vmatprep.subr.mxu0 0.0
        %2134 = vmatpush1.msra.mxu0 %v2116
        %2135 = vmatprep.subr.mxu0 0.0
        %2136 = vmatpush1.msra.mxu0 %v2117
        %2137 = vmatprep.subr.mxu0 0.0
        %2138 = vmatpush1.msra.mxu0 %v2118
        %2139 = vmatprep.subr.mxu0 0.0
        %2140 = vmatpush1.msra.mxu0 %v2119
        %2141 = vmatprep.subr.mxu0 0.0
        %2142 = vmatpush1.msra.mxu0 %v2120
        %2143 = vmatprep.subr.mxu0 0.0
        %2144 = vmatpush1.msra.mxu0 %v2121
        %2145 = vmatprep.subr.mxu0 0.0
        %2146 = vmatpush1.msra.mxu0 0.0
        %2147 = vmatprep.subr.mxu0 0.0
        %2148 = vmatpush1.msra.mxu0 0.0
        %2149 = vmatprep.subr.mxu0 0.0
        %2150 = vmatpush1.msra.mxu0 0.0
        %2151 = vmatprep.subr.mxu0 0.0
        %2152 = vmatpush1.msra.mxu0 0.0
        %2153 = vmatprep.subr.mxu0 0.0
        %2154 = vmatpush1.msra.mxu0 0.0
        %2155 = vmatprep.subr.mxu0 0.0
        %2156 = vmatpush1.msra.mxu0 0.0
        %2157 = vmatprep.subr.mxu0 0.0
        %2158 = vmatpush1.msra.mxu0 0.0
        %2159 = vmatprep.subr.mxu0 0.0
        %2160 = vmatpush1.msra.mxu0 0.0
        %2161 = vmatprep.subr.mxu0 0.0
        %2162 = vmatpush1.msra.mxu0 0.0
        %2163 = vmatprep.subr.mxu0 0.0
        %2164 = vmatpush1.msra.mxu0 0.0
        %2165 = vmatprep.subr.mxu0 0.0
        %2166 = vmatpush1.msra.mxu0 0.0
        %2167 = vmatprep.subr.mxu0 0.0
        %2168 = vmatpush1.msra.mxu0 0.0
        %2169 = vmatprep.subr.mxu0 0.0
        %2170 = vmatpush1.msra.mxu0 0.0
        %2171 = vmatprep.subr.mxu0 0.0
        %2172 = vmatpush1.msra.mxu0 0.0
        %2173 = vmatprep.subr.mxu0 0.0
        %2174 = vmatpush1.msra.mxu0 0.0
        %2175 = vmatprep.subr.mxu0 0.0
        %2176 = vmatpush1.msra.mxu0 0.0
        %2177 = vmatprep.subr.mxu0 0.0
        %2178 = vmatpush1.msra.mxu0 0.0
        %2179 = vmatprep.subr.mxu0 0.0
        %2180 = vmatpush1.msra.mxu0 0.0
        %2181 = vmatprep.subr.mxu0 0.0
        %2182 = vmatpush1.msra.mxu0 0.0
        %2183 = vmatprep.subr.mxu0 0.0
        %2184 = vmatpush1.msra.mxu0 0.0
        %2185 = vmatprep.subr.mxu0 0.0
        %2186 = vmatpush1.msra.mxu0 0.0
        %2187 = vmatprep.subr.mxu0 0.0
        %2188 = vmatpush1.msra.mxu0 0.0
        %2189 = vmatprep.mubr.f32.mxu0 0.0
        %2190 = vmatmul.mubr.f32.gmra.mrb[0].mxu0 %v2123
        %v2191 = vpop.f32.mrb[0].mxu0
        %v2192 = vadd.f32 0.0, %v2191
        %v2193 = vpop.f32.mrb[0].mxu0
        %2194 = vdwg.mxu0
        %v2195 = vadd.f32 %v2110, %v2192
        %s2196 = scalar_lea.vmem %s9, 320
        %v2197 = vld [vmem:[%s2196] sm:$0xff]
        %v2198 = vld [vmem:[%s2196 + $0x8] sm:$0xff]
        %v2199 = vld [vmem:[%s2196 + $0x10] sm:$0xff]
        %v2200 = vld [vmem:[%s2196 + $0x18] sm:$0xff]
        %v2201 = vld [vmem:[%s2196 + $0x20] sm:$0xff]
        %v2202 = vld [vmem:[%s2196 + $0x28] sm:$0xff]
        %v2203 = vld [vmem:[%s2196 + $0x30] sm:$0xff]
        %v2204 = vld [vmem:[%s2196 + $0x38] sm:$0xff]
        %v2205 = vld [vmem:[%s2196 + $0x40] sm:$0xff]
        %v2206 = vld [vmem:[%s2196 + $0x48] sm:$0xff]
        %v2207 = vrot.slane %v1855, 4
        %v2208 = vsel %vm1881, %v2207, 0
        %2210 = vmatprep.subr.mxu0 0.0
        %2211 = vmatpush1.msra.mxu0 %v2197
        %2212 = vmatprep.subr.mxu0 0.0
        %2213 = vmatpush1.msra.mxu0 %v2198
        %2214 = vmatprep.subr.mxu0 0.0
        %2215 = vmatpush1.msra.mxu0 %v2199
        %2216 = vmatprep.subr.mxu0 0.0
        %2217 = vmatpush1.msra.mxu0 %v2200
        %2218 = vmatprep.subr.mxu0 0.0
        %2219 = vmatpush1.msra.mxu0 %v2201
        %2220 = vmatprep.subr.mxu0 0.0
        %2221 = vmatpush1.msra.mxu0 %v2202
        %2222 = vmatprep.subr.mxu0 0.0
        %2223 = vmatpush1.msra.mxu0 %v2203
        %2224 = vmatprep.subr.mxu0 0.0
        %2225 = vmatpush1.msra.mxu0 %v2204
        %2226 = vmatprep.subr.mxu0 0.0
        %2227 = vmatpush1.msra.mxu0 %v2205
        %2228 = vmatprep.subr.mxu0 0.0
        %2229 = vmatpush1.msra.mxu0 %v2206
        %2230 = vmatprep.subr.mxu0 0.0
        %2231 = vmatpush1.msra.mxu0 0.0
        %2232 = vmatprep.subr.mxu0 0.0
        %2233 = vmatpush1.msra.mxu0 0.0
        %2234 = vmatprep.subr.mxu0 0.0
        %2235 = vmatpush1.msra.mxu0 0.0
        %2236 = vmatprep.subr.mxu0 0.0
        %2237 = vmatpush1.msra.mxu0 0.0
        %2238 = vmatprep.subr.mxu0 0.0
        %2239 = vmatpush1.msra.mxu0 0.0
        %2240 = vmatprep.subr.mxu0 0.0
        %2241 = vmatpush1.msra.mxu0 0.0
        %2242 = vmatprep.subr.mxu0 0.0
        %2243 = vmatpush1.msra.mxu0 0.0
        %2244 = vmatprep.subr.mxu0 0.0
        %2245 = vmatpush1.msra.mxu0 0.0
        %2246 = vmatprep.subr.mxu0 0.0
        %2247 = vmatpush1.msra.mxu0 0.0
        %2248 = vmatprep.subr.mxu0 0.0
        %2249 = vmatpush1.msra.mxu0 0.0
        %2250 = vmatprep.subr.mxu0 0.0
        %2251 = vmatpush1.msra.mxu0 0.0
        %2252 = vmatprep.subr.mxu0 0.0
        %2253 = vmatpush1.msra.mxu0 0.0
        %2254 = vmatprep.subr.mxu0 0.0
        %2255 = vmatpush1.msra.mxu0 0.0
        %2256 = vmatprep.subr.mxu0 0.0
        %2257 = vmatpush1.msra.mxu0 0.0
        %2258 = vmatprep.subr.mxu0 0.0
        %2259 = vmatpush1.msra.mxu0 0.0
        %2260 = vmatprep.subr.mxu0 0.0
        %2261 = vmatpush1.msra.mxu0 0.0
        %2262 = vmatprep.subr.mxu0 0.0
        %2263 = vmatpush1.msra.mxu0 0.0
        %2264 = vmatprep.subr.mxu0 0.0
        %2265 = vmatpush1.msra.mxu0 0.0
        %2266 = vmatprep.subr.mxu0 0.0
        %2267 = vmatpush1.msra.mxu0 0.0
        %2268 = vmatprep.subr.mxu0 0.0
        %2269 = vmatpush1.msra.mxu0 0.0
        %2270 = vmatprep.subr.mxu0 0.0
        %2271 = vmatpush1.msra.mxu0 0.0
        %2272 = vmatprep.subr.mxu0 0.0
        %2273 = vmatpush1.msra.mxu0 0.0
        %2274 = vmatprep.mubr.f32.mxu0 0.0
        %2275 = vmatmul.mubr.f32.gmra.mrb[0].mxu0 %v2208
        %v2276 = vpop.f32.mrb[0].mxu0
        %v2277 = vadd.f32 0.0, %v2276
        %v2278 = vpop.f32.mrb[0].mxu0
        %2279 = vdwg.mxu0
        %v2280 = vadd.f32 %v2195, %v2277
        %v2281 = vld [vmem:[%s10] sm:$0x1]
        %v2282 = vadd.f32 %v2280, %v2281
        %v2283 = vmax.f32 %v2282, 0.0
        %v2284 = vld [vmem:[%s11] sm:$0xff]
        %v2285 = vld [vmem:[%s11 + $0x8] sm:$0xff]
        %v2286 = vld [vmem:[%s11 + $0x10] sm:$0xff]
        %v2287 = vld [vmem:[%s11 + $0x18] sm:$0xff]
        %v2288 = vld [vmem:[%s11 + $0x20] sm:$0xff]
        %v2289 = vld [vmem:[%s11 + $0x28] sm:$0xff]
        %v2290 = vld [vmem:[%s11 + $0x30] sm:$0xff]
        %v2291 = vld [vmem:[%s11 + $0x38] sm:$0xff]
        %v2292 = vld [vmem:[%s11 + $0x40] sm:$0xff]
        %v2293 = vld [vmem:[%s11 + $0x48] sm:$0xff]
        %v2294 = vld [vmem:[%s11 + $0x50] sm:$0xff]
        %v2295 = vld [vmem:[%s11 + $0x58] sm:$0xff]
        %v2296 = vld [vmem:[%s11 + $0x60] sm:$0xff]
        %v2297 = vld [vmem:[%s11 + $0x68] sm:$0xff]
        %v2298 = vld [vmem:[%s11 + $0x70] sm:$0xff]
        %v2299 = vld [vmem:[%s12] sm:$0x1]
        %vm2300 = vcmask 982016
        %v2302 = vsel %vm2300, %v2283, 0
        %2304 = vmatprep.subr.mxu0 0.0
        %2305 = vmatpush1.msra.mxu0 %v2284
        %2306 = vmatprep.subr.mxu0 0.0
        %2307 = vmatpush1.msra.mxu0 %v2285
        %2308 = vmatprep.subr.mxu0 0.0
        %2309 = vmatpush1.msra.mxu0 %v2286
        %2310 = vmatprep.subr.mxu0 0.0
        %2311 = vmatpush1.msra.mxu0 %v2287
        %2312 = vmatprep.subr.mxu0 0.0
        %2313 = vmatpush1.msra.mxu0 %v2288
        %2314 = vmatprep.subr.mxu0 0.0
        %2315 = vmatpush1.msra.mxu0 %v2289
        %2316 = vmatprep.subr.mxu0 0.0
        %2317 = vmatpush1.msra.mxu0 %v2290
        %2318 = vmatprep.subr.mxu0 0.0
        %2319 = vmatpush1.msra.mxu0 %v2291
        %2320 = vmatprep.subr.mxu0 0.0
        %2321 = vmatpush1.msra.mxu0 %v2292
        %2322 = vmatprep.subr.mxu0 0.0
        %2323 = vmatpush1.msra.mxu0 %v2293
        %2324 = vmatprep.subr.mxu0 0.0
        %2325 = vmatpush1.msra.mxu0 %v2294
        %2326 = vmatprep.subr.mxu0 0.0
        %2327 = vmatpush1.msra.mxu0 %v2295
        %2328 = vmatprep.subr.mxu0 0.0
        %2329 = vmatpush1.msra.mxu0 %v2296
        %2330 = vmatprep.subr.mxu0 0.0
        %2331 = vmatpush1.msra.mxu0 %v2297
        %2332 = vmatprep.subr.mxu0 0.0
        %2333 = vmatpush1.msra.mxu0 %v2298
        %2334 = vmatprep.subr.mxu0 0.0
        %2335 = vmatpush1.msra.mxu0 0.0
        %2336 = vmatprep.subr.mxu0 0.0
        %2337 = vmatpush1.msra.mxu0 0.0
        %2338 = vmatprep.subr.mxu0 0.0
        %2339 = vmatpush1.msra.mxu0 0.0
        %2340 = vmatprep.subr.mxu0 0.0
        %2341 = vmatpush1.msra.mxu0 0.0
        %2342 = vmatprep.subr.mxu0 0.0
        %2343 = vmatpush1.msra.mxu0 0.0
        %2344 = vmatprep.subr.mxu0 0.0
        %2345 = vmatpush1.msra.mxu0 0.0
        %2346 = vmatprep.subr.mxu0 0.0
        %2347 = vmatpush1.msra.mxu0 0.0
        %2348 = vmatprep.subr.mxu0 0.0
        %2349 = vmatpush1.msra.mxu0 0.0
        %2350 = vmatprep.subr.mxu0 0.0
        %2351 = vmatpush1.msra.mxu0 0.0
        %2352 = vmatprep.subr.mxu0 0.0
        %2353 = vmatpush1.msra.mxu0 0.0
        %2354 = vmatprep.subr.mxu0 0.0
        %2355 = vmatpush1.msra.mxu0 0.0
        %2356 = vmatprep.subr.mxu0 0.0
        %2357 = vmatpush1.msra.mxu0 0.0
        %2358 = vmatprep.subr.mxu0 0.0
        %2359 = vmatpush1.msra.mxu0 0.0
        %2360 = vmatprep.subr.mxu0 0.0
        %2361 = vmatpush1.msra.mxu0 0.0
        %2362 = vmatprep.subr.mxu0 0.0
        %2363 = vmatpush1.msra.mxu0 0.0
        %2364 = vmatprep.subr.mxu0 0.0
        %2365 = vmatpush1.msra.mxu0 0.0
        %2366 = vmatprep.subr.mxu0 0.0
        %2367 = vmatpush1.msra.mxu0 0.0
        %2368 = vmatprep.mubr.f32.mxu0 0.0
        %2369 = vmatmul.mubr.f32.gmra.mrb[0].mxu0 %v2302
        %v2370 = vpop.f32.mrb[0].mxu0
        %v2371 = vadd.f32 %v2299, %v2370
        %v2372 = vpop.f32.mrb[0].mxu0
        %2373 = vdwg.mxu0
        %v2374 = vmax.f32 %v2371, 0.0
        %v2375 = vld [vmem:[%s13] sm:$0xff]
        %v2376 = vld [vmem:[%s13 + $0x8] sm:$0xff]
        %v2377 = vld [vmem:[%s13 + $0x10] sm:$0xff]
        %v2378 = vld [vmem:[%s13 + $0x18] sm:$0xff]
        %v2379 = vld [vmem:[%s13 + $0x20] sm:$0xff]
        %v2380 = vld [vmem:[%s13 + $0x28] sm:$0xff]
        %v2381 = vld [vmem:[%s13 + $0x30] sm:$0xff]
        %v2382 = vld [vmem:[%s13 + $0x38] sm:$0xff]
        %v2383 = vld [vmem:[%s13 + $0x40] sm:$0xff]
        %v2384 = vld [vmem:[%s13 + $0x48] sm:$0xff]
        %v2385 = vld [vmem:[%s13 + $0x50] sm:$0xf]
        %v2386 = vld [vmem:[%s14] sm:$0x1]
        %v2388 = vsel %vm1134, %v2374, 0
        %v2391 = vsel %vm897, %v2385, 0
        %2393 = vmatprep.subr.mxu0 0.0
        %2394 = vmatpush1.msra.mxu0 %v2375
        %2395 = vmatprep.subr.mxu0 0.0
        %2396 = vmatpush1.msra.mxu0 %v2376
        %2397 = vmatprep.subr.mxu0 0.0
        %2398 = vmatpush1.msra.mxu0 %v2377
        %2399 = vmatprep.subr.mxu0 0.0
        %2400 = vmatpush1.msra.mxu0 %v2378
        %2401 = vmatprep.subr.mxu0 0.0
        %2402 = vmatpush1.msra.mxu0 %v2379
        %2403 = vmatprep.subr.mxu0 0.0
        %2404 = vmatpush1.msra.mxu0 %v2380
        %2405 = vmatprep.subr.mxu0 0.0
        %2406 = vmatpush1.msra.mxu0 %v2381
        %2407 = vmatprep.subr.mxu0 0.0
        %2408 = vmatpush1.msra.mxu0 %v2382
        %2409 = vmatprep.subr.mxu0 0.0
        %2410 = vmatpush1.msra.mxu0 %v2383
        %2411 = vmatprep.subr.mxu0 0.0
        %2412 = vmatpush1.msra.mxu0 %v2384
        %2413 = vmatprep.subr.mxu0 0.0
        %2414 = vmatpush1.msra.mxu0 %v2391
        %2415 = vmatprep.subr.mxu0 0.0
        %2416 = vmatpush1.msra.mxu0 0.0
        %2417 = vmatprep.subr.mxu0 0.0
        %2418 = vmatpush1.msra.mxu0 0.0
        %2419 = vmatprep.subr.mxu0 0.0
        %2420 = vmatpush1.msra.mxu0 0.0
        %2421 = vmatprep.subr.mxu0 0.0
        %2422 = vmatpush1.msra.mxu0 0.0
        %2423 = vmatprep.subr.mxu0 0.0
        %2424 = vmatpush1.msra.mxu0 0.0
        %2425 = vmatprep.subr.mxu0 0.0
        %2426 = vmatpush1.msra.mxu0 0.0
        %2427 = vmatprep.subr.mxu0 0.0
        %2428 = vmatpush1.msra.mxu0 0.0
        %2429 = vmatprep.subr.mxu0 0.0
        %2430 = vmatpush1.msra.mxu0 0.0
        %2431 = vmatprep.subr.mxu0 0.0
        %2432 = vmatpush1.msra.mxu0 0.0
        %2433 = vmatprep.subr.mxu0 0.0
        %2434 = vmatpush1.msra.mxu0 0.0
        %2435 = vmatprep.subr.mxu0 0.0
        %2436 = vmatpush1.msra.mxu0 0.0
        %2437 = vmatprep.subr.mxu0 0.0
        %2438 = vmatpush1.msra.mxu0 0.0
        %2439 = vmatprep.subr.mxu0 0.0
        %2440 = vmatpush1.msra.mxu0 0.0
        %2441 = vmatprep.subr.mxu0 0.0
        %2442 = vmatpush1.msra.mxu0 0.0
        %2443 = vmatprep.subr.mxu0 0.0
        %2444 = vmatpush1.msra.mxu0 0.0
        %2445 = vmatprep.subr.mxu0 0.0
        %2446 = vmatpush1.msra.mxu0 0.0
        %2447 = vmatprep.subr.mxu0 0.0
        %2448 = vmatpush1.msra.mxu0 0.0
        %2449 = vmatprep.subr.mxu0 0.0
        %2450 = vmatpush1.msra.mxu0 0.0
        %2451 = vmatprep.subr.mxu0 0.0
        %2452 = vmatpush1.msra.mxu0 0.0
        %2453 = vmatprep.subr.mxu0 0.0
        %2454 = vmatpush1.msra.mxu0 0.0
        %2455 = vmatprep.subr.mxu0 0.0
        %2456 = vmatpush1.msra.mxu0 0.0
        %2457 = vmatprep.mubr.f32.mxu0 0.0
        %2458 = vmatmul.mubr.f32.gmra.mrb[0].mxu0 %v2388
        %v2459 = vpop.f32.mrb[0].mxu0
        %v2460 = vadd.f32 %v2386, %v2459
        %v2461 = vpop.f32.mrb[0].mxu0
        %2462 = vdwg.mxu0
        %vm2463 = vcmask 73728
        %2464 = vst.msk [vmem:[%s486] sm:$0x1] %vm2463, %v2460
        %s2465 = sand.u32 %s357, 1
        %s2466 = scalar_lea.sflag [#allocation3], %s2465
        %s2467 = sand.u32 %s357, 1
        %s2468 = scalar_lea.vmem [#allocation2], %s2467
        // Predicated region
        $region81: #{mycnn_forward.1} parent=79 // pred_check
          %p2469 = pneg %p367
        $region82: #{mycnn_forward.1} parent=79 // pred_check_branch
          %2471 = sbr.rel (%p2469) target = $region84
        $region83: #{mycnn_forward.1} parent=79 // pred_region
          %s2473 = ssub.s32 16, 16
          %2474 = vsyncadd %s2466, %s2473
          %s2475 = smul.addr %s29, 16
          %s2476 = scalar_lea.hbm %s15, %s2475
          %s2478 = sshll.u32 %s2468, 4
          %s2479 = int_to_ptr.vmem [resolvable:$true] %s2478
          %2481 = dma.vmem_to_hbm [thread:$0]  %s2479, 16, %s2476, %s2466
        $region84: #{mycnn_forward.1} parent=79 // pred_fallthru
          _
      $region80: #{mycnn_forward.1} parent=5 // pred_fallthru
        _
      %p2482 = scmp.le.s32.totalorder 2, %s24
      // Predicated region
      $region85: #{mycnn_forward.1} parent=5 // pred_check
        %p2483 = pneg %p2482
      $region86: #{mycnn_forward.1} parent=5 // pred_check_branch
        %2485 = sbr.rel (%p2483) target = $region88
      $region87: #{mycnn_forward.1} parent=5 // pred_region
        %s2486 = ssub.s32 %s24, 2
        // Predicated region
        $region89: #{mycnn_forward.1} parent=87 // pred_check
          %p2487 = pneg %p373
        $region90: #{mycnn_forward.1} parent=87 // pred_check_branch
          %2489 = sbr.rel (%p2487) target = $region92
        $region91: #{mycnn_forward.1} parent=87 // pred_region
          %s2490 = sand.u32 %s358, 1
          %s2491 = scalar_lea.sflag [#allocation3], %s2490
          %s2492 = sand.u32 %s358, 1
          %s2493 = scalar_lea.vmem [#allocation2], %s2492
          %2494 = dma.done %s2491, 16
        $region92: #{mycnn_forward.1} parent=87 // pred_fallthru
          _
      $region88: #{mycnn_forward.1} parent=5 // pred_fallthru
        _
    $region6: #{mycnn_forward.1} parent=1 // loop_footer
      %s28 = sadd.s32 1, %s24
    $region7: #{mycnn_forward.1} parent=1 // loop_footer_branch
      %23 = sbr.rel target = $region3
    $region8: #{mycnn_forward.1} parent=1 // loop_exit
      _
    %2495 = vsyncpa [#allocation3], 1
    %s2496 = scalar_lea.sflag [#allocation3], 1
    %2497 = vsyncpa %s2496, 1

</llo_original>
